<compile_context>
chip_gen: v7x
topology: tpu7x:2x2x1
jax: 0.10.0
libtpu: 0.0.40
codegen_flags: <defaults>
</compile_context>

<pallas_src>
import jax
import jax.numpy as jnp
from jax.experimental import pallas as pl
from jax.experimental.pallas import tpu as pltpu


def _round_up(x, m):
    return (x + m - 1) // m * m


def _cdiv(a, b):
    return -(-a // b)


def _pick_tile(rows, target=1024):
    """Row tile: multiple of 16, balanced across steps, >=2 grid steps when
    the row count allows (so v7x's two TensorCores both get work)."""
    n_steps = max(2, _cdiv(rows, target))
    tile = _round_up(_cdiv(rows, n_steps), 16)
    return min(tile, _round_up(rows, 16))


# ----------------------------------------------------------------------------
# Pallas kernels
# ----------------------------------------------------------------------------
def _conv_tanh_pool_kernel(x_ref, w_ref, b_ref, o_ref):
    """Fused conv (matmul over per-pool-tap im2col) + bias + tanh + 2x2 avgpool.

    x_ref: (4, tile_r, K)  bf16  -- 4 pool taps of unpadded-K im2col rows
    w_ref: (K, OC)         bf16  -- resident across the row grid
    b_ref: (1, OC)         f32
    o_ref: (tile_r, OC)    bf16
    """
    w = w_ref[...]
    b = b_ref[...]
    # 4 dots sharing the same RHS; f32 accumulation, f32 bias+tanh.
    # (Merging the 4 taps into one long weight-stationary dot is a v5e-only
    #  second-order win; kept as separate dots for lowering simplicity.)
    acc = jnp.tanh(jnp.dot(x_ref[0], w, preferred_element_type=jnp.float32) + b)
    for t in range(1, 4):
        acc = acc + jnp.tanh(
            jnp.dot(x_ref[t], w, preferred_element_type=jnp.float32) + b)
    o_ref[...] = (acc * 0.25).astype(o_ref.dtype)


def _head_kernel(x_ref, w5_ref, b5_ref, w6_ref, b6_ref, wo_ref, bo_ref, o_ref):
    """Fused classifier head: C5(256->120)+tanh -> F6(->84)+tanh -> OUT(->10)."""
    h5 = jnp.tanh(
        jnp.dot(x_ref[...], w5_ref[...], preferred_element_type=jnp.float32)
        + b5_ref[...]).astype(jnp.bfloat16)                 # cast once
    h6 = jnp.tanh(
        jnp.dot(h5, w6_ref[...], preferred_element_type=jnp.float32)
        + b6_ref[...]).astype(jnp.bfloat16)                 # cast once
    y = jnp.dot(h6, wo_ref[...], preferred_element_type=jnp.float32) + bo_ref[...]
    o_ref[...] = y.astype(o_ref.dtype)


# ----------------------------------------------------------------------------
# Wrappers (JAX glue + pallas_call)
# ----------------------------------------------------------------------------
def conv_tanh_pool(x, w, b):
    """x: NHWC (B,H,W,C); w: PyTorch conv layout (OC,IC,kh,kw); b: (OC,).
    Returns avgpool2x2(tanh(conv_valid(x))) as NHWC (B, Ho//2, Wo//2, OC), bf16."""
    oc, ic, kh, kw = w.shape
    B, H, W, C = x.shape
    assert C == ic
    Ho, Wo = H - kh + 1, W - kw + 1
    Ho2, Wo2 = Ho // 2, Wo // 2

    K = kh * kw * ic                      # unpadded contraction dim (25 / 150)
    R = B * Ho2 * Wo2                     # pooled output positions
    tile_r = _pick_tile(R)
    Rp = _round_up(R, tile_r)

    xb = x.astype(jnp.bfloat16)
    # Per-pool-tap im2col in (i, j, c) column order, K left unpadded.
    # TODO(synk): the patch gather is still XLA wrapper glue; a fully
    # in-kernel im2col (x as pl.ANY HBM ref + manual DMA gather) would remove
    # the remaining ~kh*kw/4 input expansion in HBM.
    taps = []
    for ti in (0, 1):
        for tj in (0, 1):
            cols = []
            for i in range(kh):
                for j in range(kw):
                    cols.append(xb[:, ti + i: ti + i + 2 * Ho2: 2,
                                      tj + j: tj + j + 2 * Wo2: 2, :])
            taps.append(jnp.stack(cols, axis=3).reshape(R, K))
    taps = jnp.stack(taps, axis=0)                          # (4, R, K) bf16
    taps = jnp.pad(taps, ((0, 0), (0, Rp - R), (0, 0)))     # pad rows only

    wm = jnp.transpose(w, (2, 3, 1, 0)).reshape(K, oc).astype(jnp.bfloat16)
    bm = b.reshape(1, oc).astype(jnp.float32)

    out = pl.pallas_call(
        _conv_tanh_pool_kernel,
        out_shape=jax.ShapeDtypeStruct((Rp, oc), jnp.bfloat16),
        grid=(Rp // tile_r,),
        in_specs=[
            pl.BlockSpec((4, tile_r, K), lambda i: (0, i, 0)),
            pl.BlockSpec((K, oc), lambda i: (0, 0)),
            pl.BlockSpec((1, oc), lambda i: (0, 0)),
        ],
        out_specs=pl.BlockSpec((tile_r, oc), lambda i: (i, 0)),
        compiler_params=pltpu.CompilerParams(
            dimension_semantics=("parallel",),
            vmem_limit_bytes=32 * 1024 * 1024),
    )(taps, wm, bm)
    # Rows are (b, i2, j2)-ordered -> contiguous reshape to NHWC, stays bf16.
    return out[:R].reshape(B, Ho2, Wo2, oc)


def classifier_head(x, w5, b5, w6, b6, wo, bo):
    """x: pooled C3 activation (B, 4, 4, 16) bf16 -> logits (B, num_classes) f32."""
    B = x.shape[0]
    K5 = x.shape[1] * x.shape[2] * x.shape[3]      # 256, (h, w, c) flatten order
    oc5 = w5.shape[0]                              # 120
    n6 = w6.shape[1]                               # 84
    no = wo.shape[1]                               # 10

    tile_m = _pick_tile(B)
    Bp = _round_up(B, tile_m)

    # Free (contiguous) reshape; already bf16 from the conv kernel.
    xp = x.reshape(B, K5).astype(jnp.bfloat16)
    xp = jnp.pad(xp, ((0, Bp - B), (0, 0)))

    w5m = jnp.transpose(w5, (2, 3, 1, 0)).reshape(K5, oc5).astype(jnp.bfloat16)
    b5m = b5.reshape(1, oc5).astype(jnp.float32)
    w6m = w6.astype(jnp.bfloat16)
    b6m = b6.reshape(1, n6).astype(jnp.float32)
    wom = wo.astype(jnp.bfloat16)
    bom = bo.reshape(1, no).astype(jnp.float32)

    out = pl.pallas_call(
        _head_kernel,
        out_shape=jax.ShapeDtypeStruct((Bp, no), jnp.float32),
        grid=(Bp // tile_m,),
        in_specs=[
            pl.BlockSpec((tile_m, K5), lambda i: (i, 0)),
            pl.BlockSpec((K5, oc5), lambda i: (0, 0)),
            pl.BlockSpec((1, oc5), lambda i: (0, 0)),
            pl.BlockSpec((oc5, n6), lambda i: (0, 0)),
            pl.BlockSpec((1, n6), lambda i: (0, 0)),
            pl.BlockSpec((n6, no), lambda i: (0, 0)),
            pl.BlockSpec((1, no), lambda i: (0, 0)),
        ],
        out_specs=pl.BlockSpec((tile_m, no), lambda i: (i, 0)),
        compiler_params=pltpu.CompilerParams(
            dimension_semantics=("parallel",),
            vmem_limit_bytes=32 * 1024 * 1024),
    )(xp, w5m, b5m, w6m, b6m, wom, bom)
    return out[:B]


# ----------------------------------------------------------------------------
# Full LeNet-5 forward
# ----------------------------------------------------------------------------
def lenet5_forward(x_nchw, params):
    x = jnp.transpose(x_nchw, (0, 2, 3, 1)).astype(jnp.float32)    # NCHW->NHWC
    x = conv_tanh_pool(x, params["c1_w"], params["c1_b"])          # (B,12,12,6)  bf16
    x = conv_tanh_pool(x, params["c3_w"], params["c3_b"])          # (B,4,4,16)   bf16
    return classifier_head(x, params["c5_w"], params["c5_b"],
                           params["f6_w"], params["f6_b"],
                           params["out_w"], params["out_b"])       # (B,10) f32


def init_params(key, in_channels=1, num_classes=10):
    ks = jax.random.split(key, 10)
    s = 0.1
    return {
        "c1_w": jax.random.normal(ks[0], (6, in_channels, 5, 5), jnp.float32) * s,
        "c1_b": jax.random.normal(ks[1], (6,), jnp.float32) * s,
        "c3_w": jax.random.normal(ks[2], (16, 6, 5, 5), jnp.float32) * s,
        "c3_b": jax.random.normal(ks[3], (16,), jnp.float32) * s,
        "c5_w": jax.random.normal(ks[4], (120, 16, 4, 4), jnp.float32) * s,
        "c5_b": jax.random.normal(ks[5], (120,), jnp.float32) * s,
        # Linear weights stored as (in, out) for direct matmul.
        "f6_w": jax.random.normal(ks[6], (120, 84), jnp.float32) * s,
        "f6_b": jax.random.normal(ks[7], (84,), jnp.float32) * s,
        "out_w": jax.random.normal(ks[8], (84, num_classes), jnp.float32) * s,
        "out_b": jax.random.normal(ks[9], (num_classes,), jnp.float32) * s,
    }


if __name__ == "__main__":
    key = jax.random.PRNGKey(0)
    pkey, xkey = jax.random.split(key)
    params = init_params(pkey, in_channels=1, num_classes=10)

    # LeNet-5 geometry: 28x28 input so the final conv (4x4) yields 1x1x120.
    x = jax.random.normal(xkey, (2, 1, 28, 28), jnp.float32)

    out = jax.jit(lenet5_forward)(x, params)
    out = jax.block_until_ready(out)
    assert out.shape == (2, 10), out.shape
    assert jnp.all(jnp.isfinite(out))
    print("KERNEL_OK")
</pallas_src>

<mosaic_0001>
module attributes {stable_mosaic.version = 11 : i64} {
  func.func @_conv_tanh_pool_kernel(%arg0: i32, %arg1: memref<4x144x25xbf16, #tpu.memory_space<vmem>>, %arg2: memref<25x6xbf16, #tpu.memory_space<vmem>>, %arg3: memref<1x6xf32, #tpu.memory_space<vmem>>, %arg4: memref<144x6xbf16, #tpu.memory_space<vmem>>) attributes {dimension_semantics = [#tpu.dimension_semantics<parallel>], iteration_bounds = array<i64: 2>, scalar_prefetch = 0 : i64, scratch_operands = 0 : i64, tpu.core_type = #tpu.core_type<tc>, window_params = [{transform_indices = @transform_0, window_bounds = array<i64: 4, 144, 25>}, {pipeline_mode = #tpu.pipeline_mode<synchronous>, transform_indices = @transform_1, window_bounds = array<i64: 25, 6>}, {pipeline_mode = #tpu.pipeline_mode<synchronous>, transform_indices = @transform_2, window_bounds = array<i64: 1, 6>}, {transform_indices = @transform_3, window_bounds = array<i64: 144, 6>}]} {
    %c0 = arith.constant 0 : index
    %c0_0 = arith.constant 0 : index
    %0 = vector.load %arg2[%c0, %c0_0] : memref<25x6xbf16, #tpu.memory_space<vmem>>, vector<25x6xbf16>
    %c0_1 = arith.constant 0 : index
    %c0_2 = arith.constant 0 : index
    %1 = vector.load %arg3[%c0_1, %c0_2] : memref<1x6xf32, #tpu.memory_space<vmem>>, vector<1x6xf32>
    %c0_3 = arith.constant 0 : index
    %c0_4 = arith.constant 0 : index
    %c0_5 = arith.constant 0 : index
    %2 = vector.load %arg1[%c0_3, %c0_4, %c0_5] : memref<4x144x25xbf16, #tpu.memory_space<vmem>>, vector<1x144x25xbf16>
    %3 = vector.shape_cast %2 : vector<1x144x25xbf16> to vector<144x25xbf16>
    %cst = arith.constant dense<0.000000e+00> : vector<144x6xf32>
    %4 = tpu.matmul %3, %0, %cst {dimension_numbers = #tpu.dot_dimension_numbers<[1], [0], [0], [1], [0, 0, 1, 1], [], []>} : vector<144x25xbf16>, vector<25x6xbf16>, vector<144x6xf32> -> vector<144x6xf32>
    %5 = vector.broadcast %1 : vector<1x6xf32> to vector<144x6xf32>
    %6 = arith.addf %4, %5 : vector<144x6xf32>
    %7 = math.tanh %6 : vector<144x6xf32>
    %c1 = arith.constant 1 : index
    %c0_6 = arith.constant 0 : index
    %c0_7 = arith.constant 0 : index
    %8 = vector.load %arg1[%c1, %c0_6, %c0_7] : memref<4x144x25xbf16, #tpu.memory_space<vmem>>, vector<1x144x25xbf16>
    %9 = vector.shape_cast %8 : vector<1x144x25xbf16> to vector<144x25xbf16>
    %cst_8 = arith.constant dense<0.000000e+00> : vector<144x6xf32>
    %10 = tpu.matmul %9, %0, %cst_8 {dimension_numbers = #tpu.dot_dimension_numbers<[1], [0], [0], [1], [0, 0, 1, 1], [], []>} : vector<144x25xbf16>, vector<25x6xbf16>, vector<144x6xf32> -> vector<144x6xf32>
    %11 = vector.broadcast %1 : vector<1x6xf32> to vector<144x6xf32>
    %12 = arith.addf %10, %11 : vector<144x6xf32>
    %13 = math.tanh %12 : vector<144x6xf32>
    %14 = arith.addf %7, %13 : vector<144x6xf32>
    %c2 = arith.constant 2 : index
    %c0_9 = arith.constant 0 : index
    %c0_10 = arith.constant 0 : index
    %15 = vector.load %arg1[%c2, %c0_9, %c0_10] : memref<4x144x25xbf16, #tpu.memory_space<vmem>>, vector<1x144x25xbf16>
    %16 = vector.shape_cast %15 : vector<1x144x25xbf16> to vector<144x25xbf16>
    %cst_11 = arith.constant dense<0.000000e+00> : vector<144x6xf32>
    %17 = tpu.matmul %16, %0, %cst_11 {dimension_numbers = #tpu.dot_dimension_numbers<[1], [0], [0], [1], [0, 0, 1, 1], [], []>} : vector<144x25xbf16>, vector<25x6xbf16>, vector<144x6xf32> -> vector<144x6xf32>
    %18 = vector.broadcast %1 : vector<1x6xf32> to vector<144x6xf32>
    %19 = arith.addf %17, %18 : vector<144x6xf32>
    %20 = math.tanh %19 : vector<144x6xf32>
    %21 = arith.addf %14, %20 : vector<144x6xf32>
    %c3 = arith.constant 3 : index
    %c0_12 = arith.constant 0 : index
    %c0_13 = arith.constant 0 : index
    %22 = vector.load %arg1[%c3, %c0_12, %c0_13] : memref<4x144x25xbf16, #tpu.memory_space<vmem>>, vector<1x144x25xbf16>
    %23 = vector.shape_cast %22 : vector<1x144x25xbf16> to vector<144x25xbf16>
    %cst_14 = arith.constant dense<0.000000e+00> : vector<144x6xf32>
    %24 = tpu.matmul %23, %0, %cst_14 {dimension_numbers = #tpu.dot_dimension_numbers<[1], [0], [0], [1], [0, 0, 1, 1], [], []>} : vector<144x25xbf16>, vector<25x6xbf16>, vector<144x6xf32> -> vector<144x6xf32>
    %25 = vector.broadcast %1 : vector<1x6xf32> to vector<144x6xf32>
    %26 = arith.addf %24, %25 : vector<144x6xf32>
    %27 = math.tanh %26 : vector<144x6xf32>
    %28 = arith.addf %21, %27 : vector<144x6xf32>
    %cst_15 = arith.constant 2.500000e-01 : f32
    %29 = vector.broadcast %cst_15 : f32 to vector<144x6xf32>
    %30 = arith.mulf %28, %29 : vector<144x6xf32>
    %31 = arith.truncf %30 : vector<144x6xf32> to vector<144x6xbf16>
    %c0_16 = arith.constant 0 : index
    %c0_17 = arith.constant 0 : index
    %32 = vector.load %arg4[%c0_16, %c0_17] : memref<144x6xbf16, #tpu.memory_space<vmem>>, vector<144x6xbf16>
    tpu.vector_store %arg4[%c0_16, %c0_17], %31 {strides = array<i32>} : memref<144x6xbf16, #tpu.memory_space<vmem>>, vector<144x6xbf16>,
    return
  }
  func.func @transform_0(%arg0: i32) -> (i32, i32, i32) {
    %c0_i32 = arith.constant 0 : i32
    %c0_i32_0 = arith.constant 0 : i32
    %c0_i32_1 = arith.constant 0 : i32
    return %c0_i32, %arg0, %c0_i32_0 : i32, i32, i32
  }
  func.func @transform_1(%arg0: i32) -> (i32, i32) {
    %c0_i32 = arith.constant 0 : i32
    %c0_i32_0 = arith.constant 0 : i32
    %c0_i32_1 = arith.constant 0 : i32
    return %c0_i32, %c0_i32_0 : i32, i32
  }
  func.func @transform_2(%arg0: i32) -> (i32, i32) {
    %c0_i32 = arith.constant 0 : i32
    %c0_i32_0 = arith.constant 0 : i32
    %c0_i32_1 = arith.constant 0 : i32
    return %c0_i32, %c0_i32_0 : i32, i32
  }
  func.func @transform_3(%arg0: i32) -> (i32, i32) {
    %c0_i32 = arith.constant 0 : i32
    %c0_i32_0 = arith.constant 0 : i32
    return %arg0, %c0_i32 : i32, i32
  }
}

module attributes {stable_mosaic.version = 11 : i64} {
  func.func @_conv_tanh_pool_kernel(%arg0: i32, %arg1: memref<4x16x150xbf16, #tpu.memory_space<vmem>>, %arg2: memref<150x16xbf16, #tpu.memory_space<vmem>>, %arg3: memref<1x16xf32, #tpu.memory_space<vmem>>, %arg4: memref<16x16xbf16, #tpu.memory_space<vmem>>) attributes {dimension_semantics = [#tpu.dimension_semantics<parallel>], iteration_bounds = array<i64: 2>, scalar_prefetch = 0 : i64, scratch_operands = 0 : i64, tpu.core_type = #tpu.core_type<tc>, window_params = [{transform_indices = @transform_0, window_bounds = array<i64: 4, 16, 150>}, {pipeline_mode = #tpu.pipeline_mode<synchronous>, transform_indices = @transform_1, window_bounds = array<i64: 150, 16>}, {pipeline_mode = #tpu.pipeline_mode<synchronous>, transform_indices = @transform_2, window_bounds = array<i64: 1, 16>}, {transform_indices = @transform_3, window_bounds = array<i64: 16, 16>}]} {
    %c0 = arith.constant 0 : index
    %c0_0 = arith.constant 0 : index
    %0 = vector.load %arg2[%c0, %c0_0] : memref<150x16xbf16, #tpu.memory_space<vmem>>, vector<150x16xbf16>
    %c0_1 = arith.constant 0 : index
    %c0_2 = arith.constant 0 : index
    %1 = vector.load %arg3[%c0_1, %c0_2] : memref<1x16xf32, #tpu.memory_space<vmem>>, vector<1x16xf32>
    %c0_3 = arith.constant 0 : index
    %c0_4 = arith.constant 0 : index
    %c0_5 = arith.constant 0 : index
    %2 = vector.load %arg1[%c0_3, %c0_4, %c0_5] : memref<4x16x150xbf16, #tpu.memory_space<vmem>>, vector<1x16x150xbf16>
    %3 = vector.shape_cast %2 : vector<1x16x150xbf16> to vector<16x150xbf16>
    %cst = arith.constant dense<0.000000e+00> : vector<16x16xf32>
    %4 = tpu.matmul %3, %0, %cst {dimension_numbers = #tpu.dot_dimension_numbers<[1], [0], [0], [1], [0, 0, 1, 1], [], []>} : vector<16x150xbf16>, vector<150x16xbf16>, vector<16x16xf32> -> vector<16x16xf32>
    %5 = vector.broadcast %1 : vector<1x16xf32> to vector<16x16xf32>
    %6 = arith.addf %4, %5 : vector<16x16xf32>
    %7 = math.tanh %6 : vector<16x16xf32>
    %c1 = arith.constant 1 : index
    %c0_6 = arith.constant 0 : index
    %c0_7 = arith.constant 0 : index
    %8 = vector.load %arg1[%c1, %c0_6, %c0_7] : memref<4x16x150xbf16, #tpu.memory_space<vmem>>, vector<1x16x150xbf16>
    %9 = vector.shape_cast %8 : vector<1x16x150xbf16> to vector<16x150xbf16>
    %cst_8 = arith.constant dense<0.000000e+00> : vector<16x16xf32>
    %10 = tpu.matmul %9, %0, %cst_8 {dimension_numbers = #tpu.dot_dimension_numbers<[1], [0], [0], [1], [0, 0, 1, 1], [], []>} : vector<16x150xbf16>, vector<150x16xbf16>, vector<16x16xf32> -> vector<16x16xf32>
    %11 = vector.broadcast %1 : vector<1x16xf32> to vector<16x16xf32>
    %12 = arith.addf %10, %11 : vector<16x16xf32>
    %13 = math.tanh %12 : vector<16x16xf32>
    %14 = arith.addf %7, %13 : vector<16x16xf32>
    %c2 = arith.constant 2 : index
    %c0_9 = arith.constant 0 : index
    %c0_10 = arith.constant 0 : index
    %15 = vector.load %arg1[%c2, %c0_9, %c0_10] : memref<4x16x150xbf16, #tpu.memory_space<vmem>>, vector<1x16x150xbf16>
    %16 = vector.shape_cast %15 : vector<1x16x150xbf16> to vector<16x150xbf16>
    %cst_11 = arith.constant dense<0.000000e+00> : vector<16x16xf32>
    %17 = tpu.matmul %16, %0, %cst_11 {dimension_numbers = #tpu.dot_dimension_numbers<[1], [0], [0], [1], [0, 0, 1, 1], [], []>} : vector<16x150xbf16>, vector<150x16xbf16>, vector<16x16xf32> -> vector<16x16xf32>
    %18 = vector.broadcast %1 : vector<1x16xf32> to vector<16x16xf32>
    %19 = arith.addf %17, %18 : vector<16x16xf32>
    %20 = math.tanh %19 : vector<16x16xf32>
    %21 = arith.addf %14, %20 : vector<16x16xf32>
    %c3 = arith.constant 3 : index
    %c0_12 = arith.constant 0 : index
    %c0_13 = arith.constant 0 : index
    %22 = vector.load %arg1[%c3, %c0_12, %c0_13] : memref<4x16x150xbf16, #tpu.memory_space<vmem>>, vector<1x16x150xbf16>
    %23 = vector.shape_cast %22 : vector<1x16x150xbf16> to vector<16x150xbf16>
    %cst_14 = arith.constant dense<0.000000e+00> : vector<16x16xf32>
    %24 = tpu.matmul %23, %0, %cst_14 {dimension_numbers = #tpu.dot_dimension_numbers<[1], [0], [0], [1], [0, 0, 1, 1], [], []>} : vector<16x150xbf16>, vector<150x16xbf16>, vector<16x16xf32> -> vector<16x16xf32>
    %25 = vector.broadcast %1 : vector<1x16xf32> to vector<16x16xf32>
    %26 = arith.addf %24, %25 : vector<16x16xf32>
    %27 = math.tanh %26 : vector<16x16xf32>
    %28 = arith.addf %21, %27 : vector<16x16xf32>
    %cst_15 = arith.constant 2.500000e-01 : f32
    %29 = vector.broadcast %cst_15 : f32 to vector<16x16xf32>
    %30 = arith.mulf %28, %29 : vector<16x16xf32>
    %31 = arith.truncf %30 : vector<16x16xf32> to vector<16x16xbf16>
    %c0_16 = arith.constant 0 : index
    %c0_17 = arith.constant 0 : index
    %32 = vector.load %arg4[%c0_16, %c0_17] : memref<16x16xbf16, #tpu.memory_space<vmem>>, vector<16x16xbf16>
    tpu.vector_store %arg4[%c0_16, %c0_17], %31 {strides = array<i32>} : memref<16x16xbf16, #tpu.memory_space<vmem>>, vector<16x16xbf16>,
    return
  }
  func.func @transform_0(%arg0: i32) -> (i32, i32, i32) {
    %c0_i32 = arith.constant 0 : i32
    %c0_i32_0 = arith.constant 0 : i32
    %c0_i32_1 = arith.constant 0 : i32
    return %c0_i32, %arg0, %c0_i32_0 : i32, i32, i32
  }
  func.func @transform_1(%arg0: i32) -> (i32, i32) {
    %c0_i32 = arith.constant 0 : i32
    %c0_i32_0 = arith.constant 0 : i32
    %c0_i32_1 = arith.constant 0 : i32
    return %c0_i32, %c0_i32_0 : i32, i32
  }
  func.func @transform_2(%arg0: i32) -> (i32, i32) {
    %c0_i32 = arith.constant 0 : i32
    %c0_i32_0 = arith.constant 0 : i32
    %c0_i32_1 = arith.constant 0 : i32
    return %c0_i32, %c0_i32_0 : i32, i32
  }
  func.func @transform_3(%arg0: i32) -> (i32, i32) {
    %c0_i32 = arith.constant 0 : i32
    %c0_i32_0 = arith.constant 0 : i32
    return %arg0, %c0_i32 : i32, i32
  }
}

module attributes {stable_mosaic.version = 11 : i64} {
  func.func @_head_kernel(%arg0: i32, %arg1: memref<16x256xbf16, #tpu.memory_space<vmem>>, %arg2: memref<256x120xbf16, #tpu.memory_space<vmem>>, %arg3: memref<1x120xf32, #tpu.memory_space<vmem>>, %arg4: memref<120x84xbf16, #tpu.memory_space<vmem>>, %arg5: memref<1x84xf32, #tpu.memory_space<vmem>>, %arg6: memref<84x10xbf16, #tpu.memory_space<vmem>>, %arg7: memref<1x10xf32, #tpu.memory_space<vmem>>, %arg8: memref<16x10xf32, #tpu.memory_space<vmem>>) attributes {dimension_semantics = [#tpu.dimension_semantics<parallel>], iteration_bounds = array<i64: 1>, scalar_prefetch = 0 : i64, scratch_operands = 0 : i64, tpu.core_type = #tpu.core_type<tc>, window_params = [{transform_indices = @transform_0, window_bounds = array<i64: 16, 256>}, {pipeline_mode = #tpu.pipeline_mode<synchronous>, transform_indices = @transform_1, window_bounds = array<i64: 256, 120>}, {pipeline_mode = #tpu.pipeline_mode<synchronous>, transform_indices = @transform_2, window_bounds = array<i64: 1, 120>}, {pipeline_mode = #tpu.pipeline_mode<synchronous>, transform_indices = @transform_3, window_bounds = array<i64: 120, 84>}, {pipeline_mode = #tpu.pipeline_mode<synchronous>, transform_indices = @transform_4, window_bounds = array<i64: 1, 84>}, {pipeline_mode = #tpu.pipeline_mode<synchronous>, transform_indices = @transform_5, window_bounds = array<i64: 84, 10>}, {pipeline_mode = #tpu.pipeline_mode<synchronous>, transform_indices = @transform_6, window_bounds = array<i64: 1, 10>}, {transform_indices = @transform_7, window_bounds = array<i64: 16, 10>}]} {
    %c0 = arith.constant 0 : index
    %c0_0 = arith.constant 0 : index
    %0 = vector.load %arg1[%c0, %c0_0] : memref<16x256xbf16, #tpu.memory_space<vmem>>, vector<16x256xbf16>
    %c0_1 = arith.constant 0 : index
    %c0_2 = arith.constant 0 : index
    %1 = vector.load %arg2[%c0_1, %c0_2] : memref<256x120xbf16, #tpu.memory_space<vmem>>, vector<256x120xbf16>
    %cst = arith.constant dense<0.000000e+00> : vector<16x120xf32>
    %2 = tpu.matmul %0, %1, %cst {dimension_numbers = #tpu.dot_dimension_numbers<[1], [0], [0], [1], [0, 0, 1, 1], [], []>} : vector<16x256xbf16>, vector<256x120xbf16>, vector<16x120xf32> -> vector<16x120xf32>
    %c0_3 = arith.constant 0 : index
    %c0_4 = arith.constant 0 : index
    %3 = vector.load %arg3[%c0_3, %c0_4] : memref<1x120xf32, #tpu.memory_space<vmem>>, vector<1x120xf32>
    %4 = vector.broadcast %3 : vector<1x120xf32> to vector<16x120xf32>
    %5 = arith.addf %2, %4 : vector<16x120xf32>
    %6 = math.tanh %5 : vector<16x120xf32>
    %7 = arith.truncf %6 : vector<16x120xf32> to vector<16x120xbf16>
    %c0_5 = arith.constant 0 : index
    %c0_6 = arith.constant 0 : index
    %8 = vector.load %arg4[%c0_5, %c0_6] : memref<120x84xbf16, #tpu.memory_space<vmem>>, vector<120x84xbf16>
    %cst_7 = arith.constant dense<0.000000e+00> : vector<16x84xf32>
    %9 = tpu.matmul %7, %8, %cst_7 {dimension_numbers = #tpu.dot_dimension_numbers<[1], [0], [0], [1], [0, 0, 1, 1], [], []>} : vector<16x120xbf16>, vector<120x84xbf16>, vector<16x84xf32> -> vector<16x84xf32>
    %c0_8 = arith.constant 0 : index
    %c0_9 = arith.constant 0 : index
    %10 = vector.load %arg5[%c0_8, %c0_9] : memref<1x84xf32, #tpu.memory_space<vmem>>, vector<1x84xf32>
    %11 = vector.broadcast %10 : vector<1x84xf32> to vector<16x84xf32>
    %12 = arith.addf %9, %11 : vector<16x84xf32>
    %13 = math.tanh %12 : vector<16x84xf32>
    %14 = arith.truncf %13 : vector<16x84xf32> to vector<16x84xbf16>
    %c0_10 = arith.constant 0 : index
    %c0_11 = arith.constant 0 : index
    %15 = vector.load %arg6[%c0_10, %c0_11] : memref<84x10xbf16, #tpu.memory_space<vmem>>, vector<84x10xbf16>
    %cst_12 = arith.constant dense<0.000000e+00> : vector<16x10xf32>
    %16 = tpu.matmul %14, %15, %cst_12 {dimension_numbers = #tpu.dot_dimension_numbers<[1], [0], [0], [1], [0, 0, 1, 1], [], []>} : vector<16x84xbf16>, vector<84x10xbf16>, vector<16x10xf32> -> vector<16x10xf32>
    %c0_13 = arith.constant 0 : index
    %c0_14 = arith.constant 0 : index
    %17 = vector.load %arg7[%c0_13, %c0_14] : memref<1x10xf32, #tpu.memory_space<vmem>>, vector<1x10xf32>
    %18 = vector.broadcast %17 : vector<1x10xf32> to vector<16x10xf32>
    %19 = arith.addf %16, %18 : vector<16x10xf32>
    %c0_15 = arith.constant 0 : index
    %c0_16 = arith.constant 0 : index
    %20 = vector.load %arg8[%c0_15, %c0_16] : memref<16x10xf32, #tpu.memory_space<vmem>>, vector<16x10xf32>
    tpu.vector_store %arg8[%c0_15, %c0_16], %19 {strides = array<i32>} : memref<16x10xf32, #tpu.memory_space<vmem>>, vector<16x10xf32>,
    return
  }
  func.func @transform_0(%arg0: i32) -> (i32, i32) {
    %c0_i32 = arith.constant 0 : i32
    %c0_i32_0 = arith.constant 0 : i32
    return %arg0, %c0_i32 : i32, i32
  }
  func.func @transform_1(%arg0: i32) -> (i32, i32) {
    %c0_i32 = arith.constant 0 : i32
    %c0_i32_0 = arith.constant 0 : i32
    %c0_i32_1 = arith.constant 0 : i32
    return %c0_i32, %c0_i32_0 : i32, i32
  }
  func.func @transform_2(%arg0: i32) -> (i32, i32) {
    %c0_i32 = arith.constant 0 : i32
    %c0_i32_0 = arith.constant 0 : i32
    %c0_i32_1 = arith.constant 0 : i32
    return %c0_i32, %c0_i32_0 : i32, i32
  }
  func.func @transform_3(%arg0: i32) -> (i32, i32) {
    %c0_i32 = arith.constant 0 : i32
    %c0_i32_0 = arith.constant 0 : i32
    %c0_i32_1 = arith.constant 0 : i32
    return %c0_i32, %c0_i32_0 : i32, i32
  }
  func.func @transform_4(%arg0: i32) -> (i32, i32) {
    %c0_i32 = arith.constant 0 : i32
    %c0_i32_0 = arith.constant 0 : i32
    %c0_i32_1 = arith.constant 0 : i32
    return %c0_i32, %c0_i32_0 : i32, i32
  }
  func.func @transform_5(%arg0: i32) -> (i32, i32) {
    %c0_i32 = arith.constant 0 : i32
    %c0_i32_0 = arith.constant 0 : i32
    %c0_i32_1 = arith.constant 0 : i32
    return %c0_i32, %c0_i32_0 : i32, i32
  }
  func.func @transform_6(%arg0: i32) -> (i32, i32) {
    %c0_i32 = arith.constant 0 : i32
    %c0_i32_0 = arith.constant 0 : i32
    %c0_i32_1 = arith.constant 0 : i32
    return %c0_i32, %c0_i32_0 : i32, i32
  }
  func.func @transform_7(%arg0: i32) -> (i32, i32) {
    %c0_i32 = arith.constant 0 : i32
    %c0_i32_0 = arith.constant 0 : i32
    return %arg0, %c0_i32 : i32, i32
  }
}

</mosaic_0001>

<llo_original>
// kernel: lenet5_forward.3
$region0: #{lenet5_forward.3}
  #allocation0 [shape = 'u32[]', space=smem, size = 0x4, offset = 0x4, fixed_abs, tag = 'smem constant byte address 0x4 - core index']
  #allocation1 [shape = 'u32[144,128]{1,0:T(1,128)}', space=vmem, size = 0x12000, scoped, tag = 'internal scratch']
  %s0 = inlined_call_operand.vmem [shape: bf16[4,288,25], index: 0, kind: input, shape index: {}]
  %s1 = inlined_call_operand.vmem [shape: bf16[25,6], index: 1, kind: input, shape index: {}]
  %s2 = inlined_call_operand.vmem [shape: f32[1,6], index: 2, kind: input, shape index: {}]
  %s3 = inlined_call_operand.vmem [shape: bf16[288,6], index: 3, kind: output, shape index: {}]
  %s4 = sld [smem:[#allocation0]]
  $region86: #{lenet5_forward.3} parent=0
    _
  %s6 = ssub.s32 1, %s4
  %s7 = scalar_select 0, %s6, %s4
  $region1: #{lenet5_forward.3} parent=0
    #allocation2 [shape = 'u8[294912]{0}', space=vmem, size = 0x48000, scoped, tag = 'input window, operand 0']
    loop: start=0, step=1, limit=4
    $region2: #{lenet5_forward.3} parent=1 // loop_pre_header
      _
    $region3: #{lenet5_forward.3} parent=1 // loop_header
      %s9 = sphi 0, %s13
      %p10 = scmp.ge.s32.totalorder %s9, 4
      %s19 = sphi 0, %s21
      %s22 = sphi 0, %s19
      %s23 = sphi 0, %s22
      %s39 = sphi 0, %s23
      %s43 = sphi 0, %s43
      %s45 = sphi 0, %s43
      %s46 = sphi 0, %s45
      %s60 = sphi 0, %s46
      %s64 = sphi 0, %s64
      %s66 = sphi 0, %s64
      %s67 = sphi 0, %s66
      %s81 = sphi 0, %s67
      %s87 = sphi 0, %s89
      %s90 = sphi 0, %s87
      %s91 = sphi 0, %s90
      %s107 = sphi 0, %s91
    $region4: #{lenet5_forward.3} parent=1 // loop_header_branch
      %12 = sbr.rel (%p10) target = $region8
    $region5: #{lenet5_forward.3} parent=1 // loop_body
      %s14 = ssub.s32 %s9, 1
      %s15 = ssub.s32 %s9, 2
      %s16 = sadd.s32 %s9, 1
      %s17 = ssub.s32 %s9, %s16
      %p18 = scmp.eq.s32.totalorder %s17, 0
      %s20 = sadd.s32 %s19, 1
      %s21 = scalar_select %p18, %s19, %s20
      %p24 = pneg %p18
      %p25 = scmp.eq.s32.totalorder %s9, 1
      %p26 = por %p24, %p25
      %p27 = scmp.ne.s32.totalorder %s19, %s22
      %p28 = scmp.eq.s32.totalorder %s9, 0
      %p29 = por %p27, %p28
      %p30 = scmp.ne.s32.totalorder %s19, %s22
      %p31 = scmp.eq.s32.totalorder %s14, 1
      %p32 = por %p30, %p31
      %p33 = scmp.ne.s32.totalorder %s22, %s23
      %p34 = scmp.eq.s32.totalorder %s14, 0
      %p35 = por %p33, %p34
      %p36 = scmp.ne.s32.totalorder %s22, %s23
      %p37 = scmp.eq.s32.totalorder %s15, 1
      %p38 = por %p36, %p37
      %p40 = scmp.ne.s32.totalorder %s23, %s39
      %p41 = scmp.eq.s32.totalorder %s15, 0
      %p42 = por %p40, %p41
      %s44 = sadd.s32 %s43, 1
      %p47 = scmp.eq.s32.totalorder %s9, 1
      %p48 = scmp.ne.s32.totalorder %s43, %s45
      %p49 = scmp.eq.s32.totalorder %s9, 0
      %p50 = por %p48, %p49
      %p51 = scmp.ne.s32.totalorder %s43, %s45
      %p52 = scmp.eq.s32.totalorder %s14, 1
      %p53 = por %p51, %p52
      %p54 = scmp.ne.s32.totalorder %s45, %s46
      %p55 = scmp.eq.s32.totalorder %s14, 0
      %p56 = por %p54, %p55
      %p57 = scmp.ne.s32.totalorder %s45, %s46
      %p58 = scmp.eq.s32.totalorder %s15, 1
      %p59 = por %p57, %p58
      %p61 = scmp.ne.s32.totalorder %s46, %s60
      %p62 = scmp.eq.s32.totalorder %s15, 0
      %p63 = por %p61, %p62
      %s65 = sadd.s32 %s64, 1
      %p68 = scmp.eq.s32.totalorder %s9, 1
      %p69 = scmp.ne.s32.totalorder %s64, %s66
      %p70 = scmp.eq.s32.totalorder %s9, 0
      %p71 = por %p69, %p70
      %p72 = scmp.ne.s32.totalorder %s64, %s66
      %p73 = scmp.eq.s32.totalorder %s14, 1
      %p74 = por %p72, %p73
      %p75 = scmp.ne.s32.totalorder %s66, %s67
      %p76 = scmp.eq.s32.totalorder %s14, 0
      %p77 = por %p75, %p76
      %p78 = scmp.ne.s32.totalorder %s66, %s67
      %p79 = scmp.eq.s32.totalorder %s15, 1
      %p80 = por %p78, %p79
      %p82 = scmp.ne.s32.totalorder %s67, %s81
      %p83 = scmp.eq.s32.totalorder %s15, 0
      %p84 = por %p82, %p83
      %s85 = ssub.s32 %s9, %s16
      %p86 = scmp.eq.s32.totalorder %s85, 0
      %s88 = sadd.s32 %s87, 1
      %s89 = scalar_select %p86, %s87, %s88
      %p92 = pneg %p86
      %p93 = scmp.eq.s32.totalorder %s9, 1
      %p94 = por %p92, %p93
      %p95 = scmp.ne.s32.totalorder %s87, %s90
      %p96 = scmp.eq.s32.totalorder %s9, 0
      %p97 = por %p95, %p96
      %p98 = scmp.ne.s32.totalorder %s87, %s90
      %p99 = scmp.eq.s32.totalorder %s14, 1
      %p100 = por %p98, %p99
      %p101 = scmp.ne.s32.totalorder %s90, %s91
      %p102 = scmp.eq.s32.totalorder %s14, 0
      %p103 = por %p101, %p102
      %p104 = scmp.ne.s32.totalorder %s90, %s91
      %p105 = scmp.eq.s32.totalorder %s15, 1
      %p106 = por %p104, %p105
      %p108 = scmp.ne.s32.totalorder %s91, %s107
      %p109 = scmp.eq.s32.totalorder %s15, 0
      %p110 = por %p108, %p109
      %p111 = scmp.le.s32.totalorder 1, %s9
      %p112 = scmp.lt.s32.totalorder %s9, 3
      %p113 = pnand %p111, %p112
      %p114 = pneg %p113
      // Predicated region
      $region9: #{lenet5_forward.3} parent=5 // pred_check
        _
      $region10: #{lenet5_forward.3} parent=5 // pred_check_branch
        %116 = sbr.rel (%p113) target = $region12
      $region11: #{lenet5_forward.3} parent=5 // pred_region
        %s117 = ssub.s32 %s9, 1
        // Predicated region
        $region13: #{lenet5_forward.3} parent=11 // pred_check
          %p118 = pneg %p56
        $region14: #{lenet5_forward.3} parent=11 // pred_check_branch
          %120 = sbr.rel (%p118) target = $region16
        $region15: #{lenet5_forward.3} parent=11 // pred_region
          _
        $region16: #{lenet5_forward.3} parent=11 // pred_fallthru
          _
        // Predicated region
        $region17: #{lenet5_forward.3} parent=11 // pred_check
          %p121 = pneg %p77
        $region18: #{lenet5_forward.3} parent=11 // pred_check_branch
          %123 = sbr.rel (%p121) target = $region20
        $region19: #{lenet5_forward.3} parent=11 // pred_region
          _
        $region20: #{lenet5_forward.3} parent=11 // pred_fallthru
          _
      $region12: #{lenet5_forward.3} parent=5 // pred_fallthru
        _
      %p124 = scmp.lt.s32.totalorder %s9, 2
      // Predicated region
      $region21: #{lenet5_forward.3} parent=5 // pred_check
        %p125 = pneg %p124
      $region22: #{lenet5_forward.3} parent=5 // pred_check_branch
        %127 = sbr.rel (%p125) target = $region24
      $region23: #{lenet5_forward.3} parent=5 // pred_region
        // Predicated region
        $region25: #{lenet5_forward.3} parent=23 // pred_check
          %p128 = pneg %p29
        $region26: #{lenet5_forward.3} parent=23 // pred_check_branch
          %130 = sbr.rel (%p128) target = $region28
        $region27: #{lenet5_forward.3} parent=23 // pred_region
          %s131 = sand.u32 %s19, 1
          %s132 = sand.u32 %s19, 1
          %s133 = smul.addr %s132, 288
          %s134 = scalar_lea.vmem [#allocation2], %s133
          %s135 = smul.u32 18, %s9
          %s136 = smul.addr %s135, 4
          %s137 = scalar_lea.vmem %s0, %s136
          // Predicated region
          $region29: #{lenet5_forward.3} parent=27 // pred_check
            _
          $region30: #{lenet5_forward.3} parent=27 // pred_check_branch
            %139 = sbr.rel (0) target = $region32
          $region31: #{lenet5_forward.3} parent=27 // pred_region
            // Predicated region
            $region33: #{lenet5_forward.3} parent=31 // pred_check
              _
            $region34: #{lenet5_forward.3} parent=31 // pred_check_branch
              %141 = sbr.rel target = $region36
            $region35: #{lenet5_forward.3} parent=31 // pred_region
              // Predicated region
              $region48: #{lenet5_forward.3} parent=35 // pred_check
                _
              $region49: #{lenet5_forward.3} parent=35 // pred_check_branch
                %298 = sbr.rel (0) target = $region51
              $region50: #{lenet5_forward.3} parent=35 // pred_region
                loop: start=0, step=1, limit=1
                $region52: #{lenet5_forward.3} parent=50 // loop_pre_header
                  _
                $region53: #{lenet5_forward.3} parent=50 // loop_header
                  %s300 = sphi 0, %s304
                  %p301 = scmp.ge.s32.totalorder %s300, 1
                  %s305 = sphi %s137, %s137
                  %s306 = sphi %s134, %s134
                $region54: #{lenet5_forward.3} parent=50 // loop_header_branch
                  %303 = sbr.rel (%p301) target = $region58
                $region55: #{lenet5_forward.3} parent=50 // loop_body
                  _
                $region56: #{lenet5_forward.3} parent=50 // loop_footer
                  %s304 = sadd.s32 1, %s300
                $region57: #{lenet5_forward.3} parent=50 // loop_footer_branch
                  %299 = sbr.rel target = $region53
                $region58: #{lenet5_forward.3} parent=50 // loop_exit
                  _
                loop: start=0, step=1, limit=1
                $region59: #{lenet5_forward.3} parent=50 // loop_pre_header
                  _
                $region60: #{lenet5_forward.3} parent=50 // loop_header
                  %s309 = sphi 0, %s313
                  %p310 = scmp.ge.s32.totalorder %s309, 1
                  %s314 = sphi %s137, %s137
                  %s315 = sphi %s134, %s134
                $region61: #{lenet5_forward.3} parent=50 // loop_header_branch
                  %312 = sbr.rel (%p310) target = $region65
                $region62: #{lenet5_forward.3} parent=50 // loop_body
                  %v316 = vld [vmem:[%s314] sm:$0xf]
                  %317 = vst [vmem:[%s315] sm:$0xf] %v316
                  %v318 = vld [vmem:[%s314 + $0x4] sm:$0xf]
                  %319 = vst [vmem:[%s315 + $0x4] sm:$0xf] %v318
                  %v320 = vld [vmem:[%s314 + $0x8] sm:$0xf]
                  %321 = vst [vmem:[%s315 + $0x8] sm:$0xf] %v320
                  %v322 = vld [vmem:[%s314 + $0xc] sm:$0xf]
                  %323 = vst [vmem:[%s315 + $0xc] sm:$0xf] %v322
                  %v324 = vld [vmem:[%s314 + $0x10] sm:$0xf]
                  %325 = vst [vmem:[%s315 + $0x10] sm:$0xf] %v324
                  %v326 = vld [vmem:[%s314 + $0x14] sm:$0xf]
                  %327 = vst [vmem:[%s315 + $0x14] sm:$0xf] %v326
                  %v328 = vld [vmem:[%s314 + $0x18] sm:$0xf]
                  %329 = vst [vmem:[%s315 + $0x18] sm:$0xf] %v328
                  %v330 = vld [vmem:[%s314 + $0x1c] sm:$0xf]
                  %331 = vst [vmem:[%s315 + $0x1c] sm:$0xf] %v330
                  %v332 = vld [vmem:[%s314 + $0x20] sm:$0xf]
                  %333 = vst [vmem:[%s315 + $0x20] sm:$0xf] %v332
                  %v334 = vld [vmem:[%s314 + $0x24] sm:$0xf]
                  %335 = vst [vmem:[%s315 + $0x24] sm:$0xf] %v334
                  %v336 = vld [vmem:[%s314 + $0x28] sm:$0xf]
                  %337 = vst [vmem:[%s315 + $0x28] sm:$0xf] %v336
                  %v338 = vld [vmem:[%s314 + $0x2c] sm:$0xf]
                  %339 = vst [vmem:[%s315 + $0x2c] sm:$0xf] %v338
                  %v340 = vld [vmem:[%s314 + $0x30] sm:$0xf]
                  %341 = vst [vmem:[%s315 + $0x30] sm:$0xf] %v340
                  %v342 = vld [vmem:[%s314 + $0x34] sm:$0xf]
                  %343 = vst [vmem:[%s315 + $0x34] sm:$0xf] %v342
                  %v344 = vld [vmem:[%s314 + $0x38] sm:$0xf]
                  %345 = vst [vmem:[%s315 + $0x38] sm:$0xf] %v344
                  %v346 = vld [vmem:[%s314 + $0x3c] sm:$0xf]
                  %347 = vst [vmem:[%s315 + $0x3c] sm:$0xf] %v346
                  %v348 = vld [vmem:[%s314 + $0x40] sm:$0xf]
                  %349 = vst [vmem:[%s315 + $0x40] sm:$0xf] %v348
                  %v350 = vld [vmem:[%s314 + $0x44] sm:$0xf]
                  %351 = vst [vmem:[%s315 + $0x44] sm:$0xf] %v350
                  %v352 = vld [vmem:[%s314 + $0x90] sm:$0xf]
                  %353 = vst [vmem:[%s315 + $0x48] sm:$0xf] %v352
                  %v354 = vld [vmem:[%s314 + $0x94] sm:$0xf]
                  %355 = vst [vmem:[%s315 + $0x4c] sm:$0xf] %v354
                  %v356 = vld [vmem:[%s314 + $0x98] sm:$0xf]
                  %357 = vst [vmem:[%s315 + $0x50] sm:$0xf] %v356
                  %v358 = vld [vmem:[%s314 + $0x9c] sm:$0xf]
                  %359 = vst [vmem:[%s315 + $0x54] sm:$0xf] %v358
                  %v360 = vld [vmem:[%s314 + $0xa0] sm:$0xf]
                  %361 = vst [vmem:[%s315 + $0x58] sm:$0xf] %v360
                  %v362 = vld [vmem:[%s314 + $0xa4] sm:$0xf]
                  %363 = vst [vmem:[%s315 + $0x5c] sm:$0xf] %v362
                  %v364 = vld [vmem:[%s314 + $0xa8] sm:$0xf]
                  %365 = vst [vmem:[%s315 + $0x60] sm:$0xf] %v364
                  %v366 = vld [vmem:[%s314 + $0xac] sm:$0xf]
                  %367 = vst [vmem:[%s315 + $0x64] sm:$0xf] %v366
                  %v368 = vld [vmem:[%s314 + $0xb0] sm:$0xf]
                  %369 = vst [vmem:[%s315 + $0x68] sm:$0xf] %v368
                  %v370 = vld [vmem:[%s314 + $0xb4] sm:$0xf]
                  %371 = vst [vmem:[%s315 + $0x6c] sm:$0xf] %v370
                  %v372 = vld [vmem:[%s314 + $0xb8] sm:$0xf]
                  %373 = vst [vmem:[%s315 + $0x70] sm:$0xf] %v372
                  %v374 = vld [vmem:[%s314 + $0xbc] sm:$0xf]
                  %375 = vst [vmem:[%s315 + $0x74] sm:$0xf] %v374
                  %v376 = vld [vmem:[%s314 + $0xc0] sm:$0xf]
                  %377 = vst [vmem:[%s315 + $0x78] sm:$0xf] %v376
                  %v378 = vld [vmem:[%s314 + $0xc4] sm:$0xf]
                  %379 = vst [vmem:[%s315 + $0x7c] sm:$0xf] %v378
                  %v380 = vld [vmem:[%s314 + $0xc8] sm:$0xf]
                  %381 = vst [vmem:[%s315 + $0x80] sm:$0xf] %v380
                  %v382 = vld [vmem:[%s314 + $0xcc] sm:$0xf]
                  %383 = vst [vmem:[%s315 + $0x84] sm:$0xf] %v382
                  %v384 = vld [vmem:[%s314 + $0xd0] sm:$0xf]
                  %385 = vst [vmem:[%s315 + $0x88] sm:$0xf] %v384
                  %v386 = vld [vmem:[%s314 + $0xd4] sm:$0xf]
                  %387 = vst [vmem:[%s315 + $0x8c] sm:$0xf] %v386
                  %v388 = vld [vmem:[%s314 + $0x120] sm:$0xf]
                  %389 = vst [vmem:[%s315 + $0x90] sm:$0xf] %v388
                  %v390 = vld [vmem:[%s314 + $0x124] sm:$0xf]
                  %391 = vst [vmem:[%s315 + $0x94] sm:$0xf] %v390
                  %v392 = vld [vmem:[%s314 + $0x128] sm:$0xf]
                  %393 = vst [vmem:[%s315 + $0x98] sm:$0xf] %v392
                  %v394 = vld [vmem:[%s314 + $0x12c] sm:$0xf]
                  %395 = vst [vmem:[%s315 + $0x9c] sm:$0xf] %v394
                  %v396 = vld [vmem:[%s314 + $0x130] sm:$0xf]
                  %397 = vst [vmem:[%s315 + $0xa0] sm:$0xf] %v396
                  %v398 = vld [vmem:[%s314 + $0x134] sm:$0xf]
                  %399 = vst [vmem:[%s315 + $0xa4] sm:$0xf] %v398
                  %v400 = vld [vmem:[%s314 + $0x138] sm:$0xf]
                  %401 = vst [vmem:[%s315 + $0xa8] sm:$0xf] %v400
                  %v402 = vld [vmem:[%s314 + $0x13c] sm:$0xf]
                  %403 = vst [vmem:[%s315 + $0xac] sm:$0xf] %v402
                  %v404 = vld [vmem:[%s314 + $0x140] sm:$0xf]
                  %405 = vst [vmem:[%s315 + $0xb0] sm:$0xf] %v404
                  %v406 = vld [vmem:[%s314 + $0x144] sm:$0xf]
                  %407 = vst [vmem:[%s315 + $0xb4] sm:$0xf] %v406
                  %v408 = vld [vmem:[%s314 + $0x148] sm:$0xf]
                  %409 = vst [vmem:[%s315 + $0xb8] sm:$0xf] %v408
                  %v410 = vld [vmem:[%s314 + $0x14c] sm:$0xf]
                  %411 = vst [vmem:[%s315 + $0xbc] sm:$0xf] %v410
                  %v412 = vld [vmem:[%s314 + $0x150] sm:$0xf]
                  %413 = vst [vmem:[%s315 + $0xc0] sm:$0xf] %v412
                  %v414 = vld [vmem:[%s314 + $0x154] sm:$0xf]
                  %415 = vst [vmem:[%s315 + $0xc4] sm:$0xf] %v414
                  %v416 = vld [vmem:[%s314 + $0x158] sm:$0xf]
                  %417 = vst [vmem:[%s315 + $0xc8] sm:$0xf] %v416
                  %v418 = vld [vmem:[%s314 + $0x15c] sm:$0xf]
                  %419 = vst [vmem:[%s315 + $0xcc] sm:$0xf] %v418
                  %v420 = vld [vmem:[%s314 + $0x160] sm:$0xf]
                  %421 = vst [vmem:[%s315 + $0xd0] sm:$0xf] %v420
                  %v422 = vld [vmem:[%s314 + $0x164] sm:$0xf]
                  %423 = vst [vmem:[%s315 + $0xd4] sm:$0xf] %v422
                  %v424 = vld [vmem:[%s314 + $0x1b0] sm:$0xf]
                  %425 = vst [vmem:[%s315 + $0xd8] sm:$0xf] %v424
                  %v426 = vld [vmem:[%s314 + $0x1b4] sm:$0xf]
                  %427 = vst [vmem:[%s315 + $0xdc] sm:$0xf] %v426
                  %v428 = vld [vmem:[%s314 + $0x1b8] sm:$0xf]
                  %429 = vst [vmem:[%s315 + $0xe0] sm:$0xf] %v428
                  %v430 = vld [vmem:[%s314 + $0x1bc] sm:$0xf]
                  %431 = vst [vmem:[%s315 + $0xe4] sm:$0xf] %v430
                  %v432 = vld [vmem:[%s314 + $0x1c0] sm:$0xf]
                  %433 = vst [vmem:[%s315 + $0xe8] sm:$0xf] %v432
                  %v434 = vld [vmem:[%s314 + $0x1c4] sm:$0xf]
                  %435 = vst [vmem:[%s315 + $0xec] sm:$0xf] %v434
                  %v436 = vld [vmem:[%s314 + $0x1c8] sm:$0xf]
                  %437 = vst [vmem:[%s315 + $0xf0] sm:$0xf] %v436
                  %v438 = vld [vmem:[%s314 + $0x1cc] sm:$0xf]
                  %439 = vst [vmem:[%s315 + $0xf4] sm:$0xf] %v438
                  %v440 = vld [vmem:[%s314 + $0x1d0] sm:$0xf]
                  %441 = vst [vmem:[%s315 + $0xf8] sm:$0xf] %v440
                  %v442 = vld [vmem:[%s314 + $0x1d4] sm:$0xf]
                  %443 = vst [vmem:[%s315 + $0xfc] sm:$0xf] %v442
                  %v444 = vld [vmem:[%s314 + $0x1d8] sm:$0xf]
                  %445 = vst [vmem:[%s315 + $0x100] sm:$0xf] %v444
                  %v446 = vld [vmem:[%s314 + $0x1dc] sm:$0xf]
                  %447 = vst [vmem:[%s315 + $0x104] sm:$0xf] %v446
                  %v448 = vld [vmem:[%s314 + $0x1e0] sm:$0xf]
                  %449 = vst [vmem:[%s315 + $0x108] sm:$0xf] %v448
                  %v450 = vld [vmem:[%s314 + $0x1e4] sm:$0xf]
                  %451 = vst [vmem:[%s315 + $0x10c] sm:$0xf] %v450
                  %v452 = vld [vmem:[%s314 + $0x1e8] sm:$0xf]
                  %453 = vst [vmem:[%s315 + $0x110] sm:$0xf] %v452
                  %v454 = vld [vmem:[%s314 + $0x1ec] sm:$0xf]
                  %455 = vst [vmem:[%s315 + $0x114] sm:$0xf] %v454
                  %v456 = vld [vmem:[%s314 + $0x1f0] sm:$0xf]
                  %457 = vst [vmem:[%s315 + $0x118] sm:$0xf] %v456
                  %v458 = vld [vmem:[%s314 + $0x1f4] sm:$0xf]
                  %459 = vst [vmem:[%s315 + $0x11c] sm:$0xf] %v458
                $region63: #{lenet5_forward.3} parent=50 // loop_footer
                  %s313 = sadd.s32 1, %s309
                $region64: #{lenet5_forward.3} parent=50 // loop_footer_branch
                  %308 = sbr.rel target = $region60
                $region65: #{lenet5_forward.3} parent=50 // loop_exit
                  _
              $region51: #{lenet5_forward.3} parent=35 // pred_fallthru
                _
            $region36: #{lenet5_forward.3} parent=31 // pred_fallthru
              _
            // Predicated region
            $region37: #{lenet5_forward.3} parent=31 // pred_check
              _
            $region38: #{lenet5_forward.3} parent=31 // pred_check_branch
              %143 = sbr.rel (0) target = $region40
            $region39: #{lenet5_forward.3} parent=31 // pred_region
              loop: start=0, step=1, limit=1
              $region41: #{lenet5_forward.3} parent=39 // loop_pre_header
                _
              $region42: #{lenet5_forward.3} parent=39 // loop_header
                %s146 = sphi 0, %s150
                %p147 = scmp.ge.s32.totalorder %s146, 1
                %s151 = sphi %s137, %s137
                %s152 = sphi %s134, %s134
              $region43: #{lenet5_forward.3} parent=39 // loop_header_branch
                %149 = sbr.rel (%p147) target = $region47
              $region44: #{lenet5_forward.3} parent=39 // loop_body
                %v153 = vld [vmem:[%s151] sm:$0xf]
                %154 = vst [vmem:[%s152] sm:$0xf] %v153
                %v155 = vld [vmem:[%s151 + $0x4] sm:$0xf]
                %156 = vst [vmem:[%s152 + $0x4] sm:$0xf] %v155
                %v157 = vld [vmem:[%s151 + $0x8] sm:$0xf]
                %158 = vst [vmem:[%s152 + $0x8] sm:$0xf] %v157
                %v159 = vld [vmem:[%s151 + $0xc] sm:$0xf]
                %160 = vst [vmem:[%s152 + $0xc] sm:$0xf] %v159
                %v161 = vld [vmem:[%s151 + $0x10] sm:$0xf]
                %162 = vst [vmem:[%s152 + $0x10] sm:$0xf] %v161
                %v163 = vld [vmem:[%s151 + $0x14] sm:$0xf]
                %164 = vst [vmem:[%s152 + $0x14] sm:$0xf] %v163
                %v165 = vld [vmem:[%s151 + $0x18] sm:$0xf]
                %166 = vst [vmem:[%s152 + $0x18] sm:$0xf] %v165
                %v167 = vld [vmem:[%s151 + $0x1c] sm:$0xf]
                %168 = vst [vmem:[%s152 + $0x1c] sm:$0xf] %v167
                %v169 = vld [vmem:[%s151 + $0x20] sm:$0xf]
                %170 = vst [vmem:[%s152 + $0x20] sm:$0xf] %v169
                %v171 = vld [vmem:[%s151 + $0x24] sm:$0xf]
                %172 = vst [vmem:[%s152 + $0x24] sm:$0xf] %v171
                %v173 = vld [vmem:[%s151 + $0x28] sm:$0xf]
                %174 = vst [vmem:[%s152 + $0x28] sm:$0xf] %v173
                %v175 = vld [vmem:[%s151 + $0x2c] sm:$0xf]
                %176 = vst [vmem:[%s152 + $0x2c] sm:$0xf] %v175
                %v177 = vld [vmem:[%s151 + $0x30] sm:$0xf]
                %178 = vst [vmem:[%s152 + $0x30] sm:$0xf] %v177
                %v179 = vld [vmem:[%s151 + $0x34] sm:$0xf]
                %180 = vst [vmem:[%s152 + $0x34] sm:$0xf] %v179
                %v181 = vld [vmem:[%s151 + $0x38] sm:$0xf]
                %182 = vst [vmem:[%s152 + $0x38] sm:$0xf] %v181
                %v183 = vld [vmem:[%s151 + $0x3c] sm:$0xf]
                %184 = vst [vmem:[%s152 + $0x3c] sm:$0xf] %v183
                %v185 = vld [vmem:[%s151 + $0x40] sm:$0xf]
                %186 = vst [vmem:[%s152 + $0x40] sm:$0xf] %v185
                %v187 = vld [vmem:[%s151 + $0x44] sm:$0xf]
                %188 = vst [vmem:[%s152 + $0x44] sm:$0xf] %v187
                %v189 = vld [vmem:[%s151 + $0x90] sm:$0xf]
                %190 = vst [vmem:[%s152 + $0x48] sm:$0xf] %v189
                %v191 = vld [vmem:[%s151 + $0x94] sm:$0xf]
                %192 = vst [vmem:[%s152 + $0x4c] sm:$0xf] %v191
                %v193 = vld [vmem:[%s151 + $0x98] sm:$0xf]
                %194 = vst [vmem:[%s152 + $0x50] sm:$0xf] %v193
                %v195 = vld [vmem:[%s151 + $0x9c] sm:$0xf]
                %196 = vst [vmem:[%s152 + $0x54] sm:$0xf] %v195
                %v197 = vld [vmem:[%s151 + $0xa0] sm:$0xf]
                %198 = vst [vmem:[%s152 + $0x58] sm:$0xf] %v197
                %v199 = vld [vmem:[%s151 + $0xa4] sm:$0xf]
                %200 = vst [vmem:[%s152 + $0x5c] sm:$0xf] %v199
                %v201 = vld [vmem:[%s151 + $0xa8] sm:$0xf]
                %202 = vst [vmem:[%s152 + $0x60] sm:$0xf] %v201
                %v203 = vld [vmem:[%s151 + $0xac] sm:$0xf]
                %204 = vst [vmem:[%s152 + $0x64] sm:$0xf] %v203
                %v205 = vld [vmem:[%s151 + $0xb0] sm:$0xf]
                %206 = vst [vmem:[%s152 + $0x68] sm:$0xf] %v205
                %v207 = vld [vmem:[%s151 + $0xb4] sm:$0xf]
                %208 = vst [vmem:[%s152 + $0x6c] sm:$0xf] %v207
                %v209 = vld [vmem:[%s151 + $0xb8] sm:$0xf]
                %210 = vst [vmem:[%s152 + $0x70] sm:$0xf] %v209
                %v211 = vld [vmem:[%s151 + $0xbc] sm:$0xf]
                %212 = vst [vmem:[%s152 + $0x74] sm:$0xf] %v211
                %v213 = vld [vmem:[%s151 + $0xc0] sm:$0xf]
                %214 = vst [vmem:[%s152 + $0x78] sm:$0xf] %v213
                %v215 = vld [vmem:[%s151 + $0xc4] sm:$0xf]
                %216 = vst [vmem:[%s152 + $0x7c] sm:$0xf] %v215
                %v217 = vld [vmem:[%s151 + $0xc8] sm:$0xf]
                %218 = vst [vmem:[%s152 + $0x80] sm:$0xf] %v217
                %v219 = vld [vmem:[%s151 + $0xcc] sm:$0xf]
                %220 = vst [vmem:[%s152 + $0x84] sm:$0xf] %v219
                %v221 = vld [vmem:[%s151 + $0xd0] sm:$0xf]
                %222 = vst [vmem:[%s152 + $0x88] sm:$0xf] %v221
                %v223 = vld [vmem:[%s151 + $0xd4] sm:$0xf]
                %224 = vst [vmem:[%s152 + $0x8c] sm:$0xf] %v223
                %v225 = vld [vmem:[%s151 + $0x120] sm:$0xf]
                %226 = vst [vmem:[%s152 + $0x90] sm:$0xf] %v225
                %v227 = vld [vmem:[%s151 + $0x124] sm:$0xf]
                %228 = vst [vmem:[%s152 + $0x94] sm:$0xf] %v227
                %v229 = vld [vmem:[%s151 + $0x128] sm:$0xf]
                %230 = vst [vmem:[%s152 + $0x98] sm:$0xf] %v229
                %v231 = vld [vmem:[%s151 + $0x12c] sm:$0xf]
                %232 = vst [vmem:[%s152 + $0x9c] sm:$0xf] %v231
                %v233 = vld [vmem:[%s151 + $0x130] sm:$0xf]
                %234 = vst [vmem:[%s152 + $0xa0] sm:$0xf] %v233
                %v235 = vld [vmem:[%s151 + $0x134] sm:$0xf]
                %236 = vst [vmem:[%s152 + $0xa4] sm:$0xf] %v235
                %v237 = vld [vmem:[%s151 + $0x138] sm:$0xf]
                %238 = vst [vmem:[%s152 + $0xa8] sm:$0xf] %v237
                %v239 = vld [vmem:[%s151 + $0x13c] sm:$0xf]
                %240 = vst [vmem:[%s152 + $0xac] sm:$0xf] %v239
                %v241 = vld [vmem:[%s151 + $0x140] sm:$0xf]
                %242 = vst [vmem:[%s152 + $0xb0] sm:$0xf] %v241
                %v243 = vld [vmem:[%s151 + $0x144] sm:$0xf]
                %244 = vst [vmem:[%s152 + $0xb4] sm:$0xf] %v243
                %v245 = vld [vmem:[%s151 + $0x148] sm:$0xf]
                %246 = vst [vmem:[%s152 + $0xb8] sm:$0xf] %v245
                %v247 = vld [vmem:[%s151 + $0x14c] sm:$0xf]
                %248 = vst [vmem:[%s152 + $0xbc] sm:$0xf] %v247
                %v249 = vld [vmem:[%s151 + $0x150] sm:$0xf]
                %250 = vst [vmem:[%s152 + $0xc0] sm:$0xf] %v249
                %v251 = vld [vmem:[%s151 + $0x154] sm:$0xf]
                %252 = vst [vmem:[%s152 + $0xc4] sm:$0xf] %v251
                %v253 = vld [vmem:[%s151 + $0x158] sm:$0xf]
                %254 = vst [vmem:[%s152 + $0xc8] sm:$0xf] %v253
                %v255 = vld [vmem:[%s151 + $0x15c] sm:$0xf]
                %256 = vst [vmem:[%s152 + $0xcc] sm:$0xf] %v255
                %v257 = vld [vmem:[%s151 + $0x160] sm:$0xf]
                %258 = vst [vmem:[%s152 + $0xd0] sm:$0xf] %v257
                %v259 = vld [vmem:[%s151 + $0x164] sm:$0xf]
                %260 = vst [vmem:[%s152 + $0xd4] sm:$0xf] %v259
                %v261 = vld [vmem:[%s151 + $0x1b0] sm:$0xf]
                %262 = vst [vmem:[%s152 + $0xd8] sm:$0xf] %v261
                %v263 = vld [vmem:[%s151 + $0x1b4] sm:$0xf]
                %264 = vst [vmem:[%s152 + $0xdc] sm:$0xf] %v263
                %v265 = vld [vmem:[%s151 + $0x1b8] sm:$0xf]
                %266 = vst [vmem:[%s152 + $0xe0] sm:$0xf] %v265
                %v267 = vld [vmem:[%s151 + $0x1bc] sm:$0xf]
                %268 = vst [vmem:[%s152 + $0xe4] sm:$0xf] %v267
                %v269 = vld [vmem:[%s151 + $0x1c0] sm:$0xf]
                %270 = vst [vmem:[%s152 + $0xe8] sm:$0xf] %v269
                %v271 = vld [vmem:[%s151 + $0x1c4] sm:$0xf]
                %272 = vst [vmem:[%s152 + $0xec] sm:$0xf] %v271
                %v273 = vld [vmem:[%s151 + $0x1c8] sm:$0xf]
                %274 = vst [vmem:[%s152 + $0xf0] sm:$0xf] %v273
                %v275 = vld [vmem:[%s151 + $0x1cc] sm:$0xf]
                %276 = vst [vmem:[%s152 + $0xf4] sm:$0xf] %v275
                %v277 = vld [vmem:[%s151 + $0x1d0] sm:$0xf]
                %278 = vst [vmem:[%s152 + $0xf8] sm:$0xf] %v277
                %v279 = vld [vmem:[%s151 + $0x1d4] sm:$0xf]
                %280 = vst [vmem:[%s152 + $0xfc] sm:$0xf] %v279
                %v281 = vld [vmem:[%s151 + $0x1d8] sm:$0xf]
                %282 = vst [vmem:[%s152 + $0x100] sm:$0xf] %v281
                %v283 = vld [vmem:[%s151 + $0x1dc] sm:$0xf]
                %284 = vst [vmem:[%s152 + $0x104] sm:$0xf] %v283
                %v285 = vld [vmem:[%s151 + $0x1e0] sm:$0xf]
                %286 = vst [vmem:[%s152 + $0x108] sm:$0xf] %v285
                %v287 = vld [vmem:[%s151 + $0x1e4] sm:$0xf]
                %288 = vst [vmem:[%s152 + $0x10c] sm:$0xf] %v287
                %v289 = vld [vmem:[%s151 + $0x1e8] sm:$0xf]
                %290 = vst [vmem:[%s152 + $0x110] sm:$0xf] %v289
                %v291 = vld [vmem:[%s151 + $0x1ec] sm:$0xf]
                %292 = vst [vmem:[%s152 + $0x114] sm:$0xf] %v291
                %v293 = vld [vmem:[%s151 + $0x1f0] sm:$0xf]
                %294 = vst [vmem:[%s152 + $0x118] sm:$0xf] %v293
                %v295 = vld [vmem:[%s151 + $0x1f4] sm:$0xf]
                %296 = vst [vmem:[%s152 + $0x11c] sm:$0xf] %v295
              $region45: #{lenet5_forward.3} parent=39 // loop_footer
                %s150 = sadd.s32 1, %s146
              $region46: #{lenet5_forward.3} parent=39 // loop_footer_branch
                %145 = sbr.rel target = $region42
              $region47: #{lenet5_forward.3} parent=39 // loop_exit
                _
            $region40: #{lenet5_forward.3} parent=31 // pred_fallthru
              _
          $region32: #{lenet5_forward.3} parent=27 // pred_fallthru
            _
          %460 = vnop
        $region28: #{lenet5_forward.3} parent=23 // pred_fallthru
          _
      $region24: #{lenet5_forward.3} parent=5 // pred_fallthru
        _
      %p461 = scmp.le.s32.totalorder 1, %s9
      %p462 = scmp.lt.s32.totalorder %s9, 3
      %p463 = pnand %p461, %p462
      %p464 = pneg %p463
      // Predicated region
      $region66: #{lenet5_forward.3} parent=5 // pred_check
        _
      $region67: #{lenet5_forward.3} parent=5 // pred_check_branch
        %466 = sbr.rel (%p463) target = $region69
      $region68: #{lenet5_forward.3} parent=5 // pred_region
        %s467 = ssub.s32 %s9, 1
        %s468 = sand.u32 %s22, 1
        %s469 = sand.u32 %s22, 1
        %s470 = smul.addr %s469, 288
        %s471 = scalar_lea.vmem [#allocation2], %s470
        // Predicated region
        $region70: #{lenet5_forward.3} parent=68 // pred_check
          %p472 = pneg %p35
        $region71: #{lenet5_forward.3} parent=68 // pred_check_branch
          %474 = sbr.rel (%p472) target = $region73
        $region72: #{lenet5_forward.3} parent=68 // pred_region
          _
        $region73: #{lenet5_forward.3} parent=68 // pred_fallthru
          _
        %s475 = sand.u32 %s22, 1
        %s476 = sand.u32 %s22, 1
        %s477 = smul.addr %s476, 288
        %s478 = scalar_lea.vmem [#allocation2], %s477
        %p479 = pneg %p35
        %p480 = pneg %p32
        %p481 = pneg %p56
        %p482 = pneg %p53
        %p483 = pneg %p77
        %p484 = pneg %p74
        %p485 = pneg %p103
        %p486 = pneg %p100
        %s487 = smul.u32 18, %s14
        %p488 = scmp.lt.s32.totalorder %s487, 35
        %s489 = scalar_select %p488, %s487, 35
        %s490 = smul.addr %s489, 4
        %s491 = scalar_lea.vmem %s3, %s490
        %s492 = smul.u32 18, %s14
        %s493 = smul.u32 18, %s14
        %p494 = scmp.lt.s32.totalorder %s493, 35
        %s495 = scalar_select %p494, %s493, 35
        %s496 = smul.addr %s495, 4
        %s497 = scalar_lea.vmem %s3, %s496
        %s498 = smul.u32 18, %s14
        %v500 = vld [vmem:[%s1] sm:$0xf]
        %v501 = vld [vmem:[%s1 + $0x4] sm:$0xf]
        %v502 = vld [vmem:[%s1 + $0x8] sm:$0xf]
        %v503 = vld [vmem:[%s1 + $0xc] sm:$0x1]
        %v504 = vld [vmem:[%s2] sm:$0x1]
        %v505 = vld [vmem:[%s471] sm:$0xf]
        %v506 = vld [vmem:[%s471 + $0x4] sm:$0xf]
        %v507 = vld [vmem:[%s471 + $0x8] sm:$0xf]
        %v508 = vld [vmem:[%s471 + $0xc] sm:$0xf]
        %v509 = vld [vmem:[%s471 + $0x10] sm:$0xf]
        %v510 = vld [vmem:[%s471 + $0x14] sm:$0xf]
        %v511 = vld [vmem:[%s471 + $0x18] sm:$0xf]
        %v512 = vld [vmem:[%s471 + $0x1c] sm:$0xf]
        %v513 = vld [vmem:[%s471 + $0x20] sm:$0xf]
        %v514 = vld [vmem:[%s471 + $0x24] sm:$0xf]
        %v515 = vld [vmem:[%s471 + $0x28] sm:$0xf]
        %v516 = vld [vmem:[%s471 + $0x2c] sm:$0xf]
        %v517 = vld [vmem:[%s471 + $0x30] sm:$0xf]
        %v518 = vld [vmem:[%s471 + $0x34] sm:$0xf]
        %v519 = vld [vmem:[%s471 + $0x38] sm:$0xf]
        %v520 = vld [vmem:[%s471 + $0x3c] sm:$0xf]
        %v521 = vld [vmem:[%s471 + $0x40] sm:$0xf]
        %v522 = vld [vmem:[%s471 + $0x44] sm:$0xf]
        %v524 = vlaneseq
        %v525 = vshrl.u32 %v524, 7
        %v526 = vsub.s32 0, %v525
        %v527 = vrot.slane %v504, %v526
        %v547 = vunpack.c.l.b16 %v505
        %v548 = vunpack.c.l.b16 %v506
        %v549 = vunpack.c.l.b16 %v507
        %v550 = vunpack.c.l.b16 %v508
        %v551 = vunpack.c.l.b16 %v509
        %v552 = vunpack.c.l.b16 %v510
        %v553 = vunpack.c.l.b16 %v511
        %v554 = vunpack.c.l.b16 %v512
        %v555 = vunpack.c.l.b16 %v513
        %v556 = vunpack.c.l.b16 %v514
        %v557 = vunpack.c.l.b16 %v515
        %v558 = vunpack.c.l.b16 %v516
        %v559 = vunpack.c.l.b16 %v517
        %v560 = vunpack.c.l.b16 %v518
        %v561 = vunpack.c.l.b16 %v519
        %v562 = vunpack.c.l.b16 %v520
        %v563 = vunpack.c.l.b16 %v521
        %v564 = vunpack.c.l.b16 %v522
        %v565 = vpack.c.b16 %v548, %v547
        %v566 = vpack.c.b16 %v550, %v549
        %v567 = vpack.c.b16 %v552, %v551
        %v568 = vpack.c.b16 %v554, %v553
        %v569 = vpack.c.b16 %v556, %v555
        %v570 = vpack.c.b16 %v558, %v557
        %v571 = vpack.c.b16 %v560, %v559
        %v572 = vpack.c.b16 %v562, %v561
        %v573 = vpack.c.b16 %v564, %v563
        %v578 = vunpack.c.l.b16 %v500
        %v579 = vunpack.c.l.b16 %v501
        %v580 = vunpack.c.l.b16 %v502
        %v581 = vunpack.c.l.b16 %v503
        %v582 = vpack.c.b16 %v579, %v578
        %v583 = vpack.c.b16 %v581, %v580
        %vm585 = vcmask 203776
        %v587 = vsel %vm585, %v565, 0
        %v590 = vsel %vm585, %v566, 0
        %v593 = vsel %vm585, %v567, 0
        %v596 = vsel %vm585, %v568, 0
        %v599 = vsel %vm585, %v569, 0
        %v602 = vsel %vm585, %v570, 0
        %v605 = vsel %vm585, %v571, 0
        %v608 = vsel %vm585, %v572, 0
        %v611 = vsel %vm585, %v573, 0
        %vm613 = vcmask 1043456
        %vm614 = vcmask 1044480
        %v615 = vsel %vm613, 4294967295, 65535
        %v616 = vsel %vm614, %v615, 0
        %v618 = vand.u32 %v583, %v616
        %620 = vmatprep.subr.bf16.mxu0 0
        %621 = vmatpush1.bf16.msra.mxu0 %v582
        %622 = vmatprep.subr.bf16.mxu0 0
        %623 = vmatpush1.bf16.msra.mxu0 %v618
        %624 = vmatprep.subr.bf16.mxu0 0
        %625 = vmatpush1.bf16.msra.mxu0 0
        %626 = vmatprep.subr.bf16.mxu0 0
        %627 = vmatpush1.bf16.msra.mxu0 0
        %628 = vmatprep.subr.bf16.mxu0 0
        %629 = vmatpush1.bf16.msra.mxu0 0
        %630 = vmatprep.subr.bf16.mxu0 0
        %631 = vmatpush1.bf16.msra.mxu0 0
        %632 = vmatprep.subr.bf16.mxu0 0
        %633 = vmatpush1.bf16.msra.mxu0 0
        %634 = vmatprep.subr.bf16.mxu0 0
        %635 = vmatpush1.bf16.msra.mxu0 0
        %636 = vmatprep.subr.bf16.mxu0 0
        %637 = vmatpush1.bf16.msra.mxu0 0
        %638 = vmatprep.subr.bf16.mxu0 0
        %639 = vmatpush1.bf16.msra.mxu0 0
        %640 = vmatprep.subr.bf16.mxu0 0
        %641 = vmatpush1.bf16.msra.mxu0 0
        %642 = vmatprep.subr.bf16.mxu0 0
        %643 = vmatpush1.bf16.msra.mxu0 0
        %644 = vmatprep.subr.bf16.mxu0 0
        %645 = vmatpush1.bf16.msra.mxu0 0
        %646 = vmatprep.subr.bf16.mxu0 0
        %647 = vmatpush1.bf16.msra.mxu0 0
        %648 = vmatprep.subr.bf16.mxu0 0
        %649 = vmatpush1.bf16.msra.mxu0 0
        %650 = vmatprep.subr.bf16.mxu0 0
        %651 = vmatpush1.bf16.msra.mxu0 0
        %652 = vmatprep.mubr.bf16.mxu0 0
        %653 = vmatmul.mubr.bf16.gmra.mrb[0].mxu0 %v587
        %v654 = vpop.f32.mrb[0].mxu0
        %v655 = vadd.f32 %v527, %v654
        %v656 = vpop.f32.mrb[0].mxu0
        %v657 = vpop.f32.mrb[0].mxu0
        %v658 = vadd.f32 %v527, %v657
        %v659 = vpop.f32.mrb[0].mxu0
        %660 = vmatprep.mubr.bf16.mxu0 0
        %661 = vmatmul.mubr.bf16.gmra.mrb[0].mxu0 %v590
        %v662 = vpop.f32.mrb[0].mxu0
        %v663 = vadd.f32 %v527, %v662
        %v664 = vpop.f32.mrb[0].mxu0
        %v665 = vpop.f32.mrb[0].mxu0
        %v666 = vadd.f32 %v527, %v665
        %v667 = vpop.f32.mrb[0].mxu0
        %668 = vmatprep.mubr.bf16.mxu0 0
        %669 = vmatmul.mubr.bf16.gmra.mrb[0].mxu0 %v593
        %v670 = vpop.f32.mrb[0].mxu0
        %v671 = vadd.f32 %v527, %v670
        %v672 = vpop.f32.mrb[0].mxu0
        %v673 = vpop.f32.mrb[0].mxu0
        %v674 = vadd.f32 %v527, %v673
        %v675 = vpop.f32.mrb[0].mxu0
        %676 = vmatprep.mubr.bf16.mxu0 0
        %677 = vmatmul.mubr.bf16.gmra.mrb[0].mxu0 %v596
        %v678 = vpop.f32.mrb[0].mxu0
        %v679 = vadd.f32 %v527, %v678
        %v680 = vpop.f32.mrb[0].mxu0
        %v681 = vpop.f32.mrb[0].mxu0
        %v682 = vadd.f32 %v527, %v681
        %v683 = vpop.f32.mrb[0].mxu0
        %684 = vmatprep.mubr.bf16.mxu0 0
        %685 = vmatmul.mubr.bf16.gmra.mrb[0].mxu0 %v599
        %v686 = vpop.f32.mrb[0].mxu0
        %v687 = vadd.f32 %v527, %v686
        %v688 = vpop.f32.mrb[0].mxu0
        %v689 = vpop.f32.mrb[0].mxu0
        %v690 = vadd.f32 %v527, %v689
        %v691 = vpop.f32.mrb[0].mxu0
        %692 = vmatprep.mubr.bf16.mxu0 0
        %693 = vmatmul.mubr.bf16.gmra.mrb[0].mxu0 %v602
        %v694 = vpop.f32.mrb[0].mxu0
        %v695 = vadd.f32 %v527, %v694
        %v696 = vpop.f32.mrb[0].mxu0
        %v697 = vpop.f32.mrb[0].mxu0
        %v698 = vadd.f32 %v527, %v697
        %v699 = vpop.f32.mrb[0].mxu0
        %700 = vmatprep.mubr.bf16.mxu0 0
        %701 = vmatmul.mubr.bf16.gmra.mrb[0].mxu0 %v605
        %v702 = vpop.f32.mrb[0].mxu0
        %v703 = vadd.f32 %v527, %v702
        %v704 = vpop.f32.mrb[0].mxu0
        %v705 = vpop.f32.mrb[0].mxu0
        %v706 = vadd.f32 %v527, %v705
        %v707 = vpop.f32.mrb[0].mxu0
        %708 = vmatprep.mubr.bf16.mxu0 0
        %709 = vmatmul.mubr.bf16.gmra.mrb[0].mxu0 %v608
        %v710 = vpop.f32.mrb[0].mxu0
        %v711 = vadd.f32 %v527, %v710
        %v712 = vpop.f32.mrb[0].mxu0
        %v713 = vpop.f32.mrb[0].mxu0
        %v714 = vadd.f32 %v527, %v713
        %v715 = vpop.f32.mrb[0].mxu0
        %716 = vmatprep.mubr.bf16.mxu0 0
        %717 = vmatmul.mubr.bf16.gmra.mrb[0].mxu0 %v611
        %v718 = vpop.f32.mrb[0].mxu0
        %v719 = vadd.f32 %v527, %v718
        %v720 = vpop.f32.mrb[0].mxu0
        %v721 = vpop.f32.mrb[0].mxu0
        %v722 = vadd.f32 %v527, %v721
        %v723 = vpop.f32.mrb[0].mxu0
        %724 = vdwg.mxu0
        %v725 = vtanh.pop %v655
        %v726 = vtanh.pop %v658
        %v727 = vtanh.pop %v663
        %v728 = vtanh.pop %v666
        %v729 = vtanh.pop %v671
        %v730 = vtanh.pop %v674
        %v731 = vtanh.pop %v679
        %v732 = vtanh.pop %v682
        %v733 = vtanh.pop %v687
        %v734 = vtanh.pop %v690
        %v735 = vtanh.pop %v695
        %v736 = vtanh.pop %v698
        %v737 = vtanh.pop %v703
        %v738 = vtanh.pop %v706
        %v739 = vtanh.pop %v711
        %v740 = vtanh.pop %v714
        %v741 = vtanh.pop %v719
        %v742 = vtanh.pop %v722
        %s743 = scalar_lea.vmem %s471, 72 [#allocation2]
        %v744 = vld [vmem:[%s743] sm:$0xf]
        %v745 = vld [vmem:[%s743 + $0x4] sm:$0xf]
        %v746 = vld [vmem:[%s743 + $0x8] sm:$0xf]
        %v747 = vld [vmem:[%s743 + $0xc] sm:$0xf]
        %v748 = vld [vmem:[%s743 + $0x10] sm:$0xf]
        %v749 = vld [vmem:[%s743 + $0x14] sm:$0xf]
        %v750 = vld [vmem:[%s743 + $0x18] sm:$0xf]
        %v751 = vld [vmem:[%s743 + $0x1c] sm:$0xf]
        %v752 = vld [vmem:[%s743 + $0x20] sm:$0xf]
        %v753 = vld [vmem:[%s743 + $0x24] sm:$0xf]
        %v754 = vld [vmem:[%s743 + $0x28] sm:$0xf]
        %v755 = vld [vmem:[%s743 + $0x2c] sm:$0xf]
        %v756 = vld [vmem:[%s743 + $0x30] sm:$0xf]
        %v757 = vld [vmem:[%s743 + $0x34] sm:$0xf]
        %v758 = vld [vmem:[%s743 + $0x38] sm:$0xf]
        %v759 = vld [vmem:[%s743 + $0x3c] sm:$0xf]
        %v760 = vld [vmem:[%s743 + $0x40] sm:$0xf]
        %v761 = vld [vmem:[%s743 + $0x44] sm:$0xf]
        %v780 = vunpack.c.l.b16 %v744
        %v781 = vunpack.c.l.b16 %v745
        %v782 = vunpack.c.l.b16 %v746
        %v783 = vunpack.c.l.b16 %v747
        %v784 = vunpack.c.l.b16 %v748
        %v785 = vunpack.c.l.b16 %v749
        %v786 = vunpack.c.l.b16 %v750
        %v787 = vunpack.c.l.b16 %v751
        %v788 = vunpack.c.l.b16 %v752
        %v789 = vunpack.c.l.b16 %v753
        %v790 = vunpack.c.l.b16 %v754
        %v791 = vunpack.c.l.b16 %v755
        %v792 = vunpack.c.l.b16 %v756
        %v793 = vunpack.c.l.b16 %v757
        %v794 = vunpack.c.l.b16 %v758
        %v795 = vunpack.c.l.b16 %v759
        %v796 = vunpack.c.l.b16 %v760
        %v797 = vunpack.c.l.b16 %v761
        %v798 = vpack.c.b16 %v781, %v780
        %v799 = vpack.c.b16 %v783, %v782
        %v800 = vpack.c.b16 %v785, %v784
        %v801 = vpack.c.b16 %v787, %v786
        %v802 = vpack.c.b16 %v789, %v788
        %v803 = vpack.c.b16 %v791, %v790
        %v804 = vpack.c.b16 %v793, %v792
        %v805 = vpack.c.b16 %v795, %v794
        %v806 = vpack.c.b16 %v797, %v796
        %v808 = vsel %vm585, %v798, 0
        %v811 = vsel %vm585, %v799, 0
        %v814 = vsel %vm585, %v800, 0
        %v817 = vsel %vm585, %v801, 0
        %v820 = vsel %vm585, %v802, 0
        %v823 = vsel %vm585, %v803, 0
        %v826 = vsel %vm585, %v804, 0
        %v829 = vsel %vm585, %v805, 0
        %v832 = vsel %vm585, %v806, 0
        %834 = vmatprep.subr.bf16.mxu0 0
        %835 = vmatpush1.bf16.msra.mxu0 %v582
        %836 = vmatprep.subr.bf16.mxu0 0
        %837 = vmatpush1.bf16.msra.mxu0 %v618
        %838 = vmatprep.subr.bf16.mxu0 0
        %839 = vmatpush1.bf16.msra.mxu0 0
        %840 = vmatprep.subr.bf16.mxu0 0
        %841 = vmatpush1.bf16.msra.mxu0 0
        %842 = vmatprep.subr.bf16.mxu0 0
        %843 = vmatpush1.bf16.msra.mxu0 0
        %844 = vmatprep.subr.bf16.mxu0 0
        %845 = vmatpush1.bf16.msra.mxu0 0
        %846 = vmatprep.subr.bf16.mxu0 0
        %847 = vmatpush1.bf16.msra.mxu0 0
        %848 = vmatprep.subr.bf16.mxu0 0
        %849 = vmatpush1.bf16.msra.mxu0 0
        %850 = vmatprep.subr.bf16.mxu0 0
        %851 = vmatpush1.bf16.msra.mxu0 0
        %852 = vmatprep.subr.bf16.mxu0 0
        %853 = vmatpush1.bf16.msra.mxu0 0
        %854 = vmatprep.subr.bf16.mxu0 0
        %855 = vmatpush1.bf16.msra.mxu0 0
        %856 = vmatprep.subr.bf16.mxu0 0
        %857 = vmatpush1.bf16.msra.mxu0 0
        %858 = vmatprep.subr.bf16.mxu0 0
        %859 = vmatpush1.bf16.msra.mxu0 0
        %860 = vmatprep.subr.bf16.mxu0 0
        %861 = vmatpush1.bf16.msra.mxu0 0
        %862 = vmatprep.subr.bf16.mxu0 0
        %863 = vmatpush1.bf16.msra.mxu0 0
        %864 = vmatprep.subr.bf16.mxu0 0
        %865 = vmatpush1.bf16.msra.mxu0 0
        %866 = vmatprep.mubr.bf16.mxu0 0
        %867 = vmatmul.mubr.bf16.gmra.mrb[0].mxu0 %v808
        %v868 = vpop.f32.mrb[0].mxu0
        %v869 = vadd.f32 %v527, %v868
        %v870 = vpop.f32.mrb[0].mxu0
        %v871 = vpop.f32.mrb[0].mxu0
        %v872 = vadd.f32 %v527, %v871
        %v873 = vpop.f32.mrb[0].mxu0
        %874 = vmatprep.mubr.bf16.mxu0 0
        %875 = vmatmul.mubr.bf16.gmra.mrb[0].mxu0 %v811
        %v876 = vpop.f32.mrb[0].mxu0
        %v877 = vadd.f32 %v527, %v876
        %v878 = vpop.f32.mrb[0].mxu0
        %v879 = vpop.f32.mrb[0].mxu0
        %v880 = vadd.f32 %v527, %v879
        %v881 = vpop.f32.mrb[0].mxu0
        %882 = vmatprep.mubr.bf16.mxu0 0
        %883 = vmatmul.mubr.bf16.gmra.mrb[0].mxu0 %v814
        %v884 = vpop.f32.mrb[0].mxu0
        %v885 = vadd.f32 %v527, %v884
        %v886 = vpop.f32.mrb[0].mxu0
        %v887 = vpop.f32.mrb[0].mxu0
        %v888 = vadd.f32 %v527, %v887
        %v889 = vpop.f32.mrb[0].mxu0
        %890 = vmatprep.mubr.bf16.mxu0 0
        %891 = vmatmul.mubr.bf16.gmra.mrb[0].mxu0 %v817
        %v892 = vpop.f32.mrb[0].mxu0
        %v893 = vadd.f32 %v527, %v892
        %v894 = vpop.f32.mrb[0].mxu0
        %v895 = vpop.f32.mrb[0].mxu0
        %v896 = vadd.f32 %v527, %v895
        %v897 = vpop.f32.mrb[0].mxu0
        %898 = vmatprep.mubr.bf16.mxu0 0
        %899 = vmatmul.mubr.bf16.gmra.mrb[0].mxu0 %v820
        %v900 = vpop.f32.mrb[0].mxu0
        %v901 = vadd.f32 %v527, %v900
        %v902 = vpop.f32.mrb[0].mxu0
        %v903 = vpop.f32.mrb[0].mxu0
        %v904 = vadd.f32 %v527, %v903
        %v905 = vpop.f32.mrb[0].mxu0
        %906 = vmatprep.mubr.bf16.mxu0 0
        %907 = vmatmul.mubr.bf16.gmra.mrb[0].mxu0 %v823
        %v908 = vpop.f32.mrb[0].mxu0
        %v909 = vadd.f32 %v527, %v908
        %v910 = vpop.f32.mrb[0].mxu0
        %v911 = vpop.f32.mrb[0].mxu0
        %v912 = vadd.f32 %v527, %v911
        %v913 = vpop.f32.mrb[0].mxu0
        %914 = vmatprep.mubr.bf16.mxu0 0
        %915 = vmatmul.mubr.bf16.gmra.mrb[0].mxu0 %v826
        %v916 = vpop.f32.mrb[0].mxu0
        %v917 = vadd.f32 %v527, %v916
        %v918 = vpop.f32.mrb[0].mxu0
        %v919 = vpop.f32.mrb[0].mxu0
        %v920 = vadd.f32 %v527, %v919
        %v921 = vpop.f32.mrb[0].mxu0
        %922 = vmatprep.mubr.bf16.mxu0 0
        %923 = vmatmul.mubr.bf16.gmra.mrb[0].mxu0 %v829
        %v924 = vpop.f32.mrb[0].mxu0
        %v925 = vadd.f32 %v527, %v924
        %v926 = vpop.f32.mrb[0].mxu0
        %v927 = vpop.f32.mrb[0].mxu0
        %v928 = vadd.f32 %v527, %v927
        %v929 = vpop.f32.mrb[0].mxu0
        %930 = vmatprep.mubr.bf16.mxu0 0
        %931 = vmatmul.mubr.bf16.gmra.mrb[0].mxu0 %v832
        %v932 = vpop.f32.mrb[0].mxu0
        %v933 = vadd.f32 %v527, %v932
        %v934 = vpop.f32.mrb[0].mxu0
        %v935 = vpop.f32.mrb[0].mxu0
        %v936 = vadd.f32 %v527, %v935
        %v937 = vpop.f32.mrb[0].mxu0
        %938 = vdwg.mxu0
        %v939 = vtanh.pop %v869
        %v940 = vtanh.pop %v872
        %v941 = vtanh.pop %v877
        %v942 = vtanh.pop %v880
        %v943 = vtanh.pop %v885
        %v944 = vtanh.pop %v888
        %v945 = vtanh.pop %v893
        %v946 = vtanh.pop %v896
        %v947 = vtanh.pop %v901
        %v948 = vtanh.pop %v904
        %v949 = vtanh.pop %v909
        %v950 = vtanh.pop %v912
        %v951 = vtanh.pop %v917
        %v952 = vtanh.pop %v920
        %v953 = vtanh.pop %v925
        %v954 = vtanh.pop %v928
        %v955 = vtanh.pop %v933
        %v956 = vtanh.pop %v936
        %v957 = vadd.f32 %v725, %v939
        %v958 = vadd.f32 %v726, %v940
        %v959 = vadd.f32 %v727, %v941
        %v960 = vadd.f32 %v728, %v942
        %v961 = vadd.f32 %v729, %v943
        %v962 = vadd.f32 %v730, %v944
        %v963 = vadd.f32 %v731, %v945
        %v964 = vadd.f32 %v732, %v946
        %v965 = vadd.f32 %v733, %v947
        %v966 = vadd.f32 %v734, %v948
        %v967 = vadd.f32 %v735, %v949
        %v968 = vadd.f32 %v736, %v950
        %v969 = vadd.f32 %v737, %v951
        %v970 = vadd.f32 %v738, %v952
        %v971 = vadd.f32 %v739, %v953
        %v972 = vadd.f32 %v740, %v954
        %v973 = vadd.f32 %v741, %v955
        %v974 = vadd.f32 %v742, %v956
        %s975 = scalar_lea.vmem %s471, 144 [#allocation2]
        %v976 = vld [vmem:[%s975] sm:$0xf]
        %v977 = vld [vmem:[%s975 + $0x4] sm:$0xf]
        %v978 = vld [vmem:[%s975 + $0x8] sm:$0xf]
        %v979 = vld [vmem:[%s975 + $0xc] sm:$0xf]
        %v980 = vld [vmem:[%s975 + $0x10] sm:$0xf]
        %v981 = vld [vmem:[%s975 + $0x14] sm:$0xf]
        %v982 = vld [vmem:[%s975 + $0x18] sm:$0xf]
        %v983 = vld [vmem:[%s975 + $0x1c] sm:$0xf]
        %v984 = vld [vmem:[%s975 + $0x20] sm:$0xf]
        %v985 = vld [vmem:[%s975 + $0x24] sm:$0xf]
        %v986 = vld [vmem:[%s975 + $0x28] sm:$0xf]
        %v987 = vld [vmem:[%s975 + $0x2c] sm:$0xf]
        %v988 = vld [vmem:[%s975 + $0x30] sm:$0xf]
        %v989 = vld [vmem:[%s975 + $0x34] sm:$0xf]
        %v990 = vld [vmem:[%s975 + $0x38] sm:$0xf]
        %v991 = vld [vmem:[%s975 + $0x3c] sm:$0xf]
        %v992 = vld [vmem:[%s975 + $0x40] sm:$0xf]
        %v993 = vld [vmem:[%s975 + $0x44] sm:$0xf]
        %v1012 = vunpack.c.l.b16 %v976
        %v1013 = vunpack.c.l.b16 %v977
        %v1014 = vunpack.c.l.b16 %v978
        %v1015 = vunpack.c.l.b16 %v979
        %v1016 = vunpack.c.l.b16 %v980
        %v1017 = vunpack.c.l.b16 %v981
        %v1018 = vunpack.c.l.b16 %v982
        %v1019 = vunpack.c.l.b16 %v983
        %v1020 = vunpack.c.l.b16 %v984
        %v1021 = vunpack.c.l.b16 %v985
        %v1022 = vunpack.c.l.b16 %v986
        %v1023 = vunpack.c.l.b16 %v987
        %v1024 = vunpack.c.l.b16 %v988
        %v1025 = vunpack.c.l.b16 %v989
        %v1026 = vunpack.c.l.b16 %v990
        %v1027 = vunpack.c.l.b16 %v991
        %v1028 = vunpack.c.l.b16 %v992
        %v1029 = vunpack.c.l.b16 %v993
        %v1030 = vpack.c.b16 %v1013, %v1012
        %v1031 = vpack.c.b16 %v1015, %v1014
        %v1032 = vpack.c.b16 %v1017, %v1016
        %v1033 = vpack.c.b16 %v1019, %v1018
        %v1034 = vpack.c.b16 %v1021, %v1020
        %v1035 = vpack.c.b16 %v1023, %v1022
        %v1036 = vpack.c.b16 %v1025, %v1024
        %v1037 = vpack.c.b16 %v1027, %v1026
        %v1038 = vpack.c.b16 %v1029, %v1028
        %v1040 = vsel %vm585, %v1030, 0
        %v1043 = vsel %vm585, %v1031, 0
        %v1046 = vsel %vm585, %v1032, 0
        %v1049 = vsel %vm585, %v1033, 0
        %v1052 = vsel %vm585, %v1034, 0
        %v1055 = vsel %vm585, %v1035, 0
        %v1058 = vsel %vm585, %v1036, 0
        %v1061 = vsel %vm585, %v1037, 0
        %v1064 = vsel %vm585, %v1038, 0
        %1066 = vmatprep.subr.bf16.mxu0 0
        %1067 = vmatpush1.bf16.msra.mxu0 %v582
        %1068 = vmatprep.subr.bf16.mxu0 0
        %1069 = vmatpush1.bf16.msra.mxu0 %v618
        %1070 = vmatprep.subr.bf16.mxu0 0
        %1071 = vmatpush1.bf16.msra.mxu0 0
        %1072 = vmatprep.subr.bf16.mxu0 0
        %1073 = vmatpush1.bf16.msra.mxu0 0
        %1074 = vmatprep.subr.bf16.mxu0 0
        %1075 = vmatpush1.bf16.msra.mxu0 0
        %1076 = vmatprep.subr.bf16.mxu0 0
        %1077 = vmatpush1.bf16.msra.mxu0 0
        %1078 = vmatprep.subr.bf16.mxu0 0
        %1079 = vmatpush1.bf16.msra.mxu0 0
        %1080 = vmatprep.subr.bf16.mxu0 0
        %1081 = vmatpush1.bf16.msra.mxu0 0
        %1082 = vmatprep.subr.bf16.mxu0 0
        %1083 = vmatpush1.bf16.msra.mxu0 0
        %1084 = vmatprep.subr.bf16.mxu0 0
        %1085 = vmatpush1.bf16.msra.mxu0 0
        %1086 = vmatprep.subr.bf16.mxu0 0
        %1087 = vmatpush1.bf16.msra.mxu0 0
        %1088 = vmatprep.subr.bf16.mxu0 0
        %1089 = vmatpush1.bf16.msra.mxu0 0
        %1090 = vmatprep.subr.bf16.mxu0 0
        %1091 = vmatpush1.bf16.msra.mxu0 0
        %1092 = vmatprep.subr.bf16.mxu0 0
        %1093 = vmatpush1.bf16.msra.mxu0 0
        %1094 = vmatprep.subr.bf16.mxu0 0
        %1095 = vmatpush1.bf16.msra.mxu0 0
        %1096 = vmatprep.subr.bf16.mxu0 0
        %1097 = vmatpush1.bf16.msra.mxu0 0
        %1098 = vmatprep.mubr.bf16.mxu0 0
        %1099 = vmatmul.mubr.bf16.gmra.mrb[0].mxu0 %v1040
        %v1100 = vpop.f32.mrb[0].mxu0
        %v1101 = vadd.f32 %v527, %v1100
        %v1102 = vpop.f32.mrb[0].mxu0
        %v1103 = vpop.f32.mrb[0].mxu0
        %v1104 = vadd.f32 %v527, %v1103
        %v1105 = vpop.f32.mrb[0].mxu0
        %1106 = vmatprep.mubr.bf16.mxu0 0
        %1107 = vmatmul.mubr.bf16.gmra.mrb[0].mxu0 %v1043
        %v1108 = vpop.f32.mrb[0].mxu0
        %v1109 = vadd.f32 %v527, %v1108
        %v1110 = vpop.f32.mrb[0].mxu0
        %v1111 = vpop.f32.mrb[0].mxu0
        %v1112 = vadd.f32 %v527, %v1111
        %v1113 = vpop.f32.mrb[0].mxu0
        %1114 = vmatprep.mubr.bf16.mxu0 0
        %1115 = vmatmul.mubr.bf16.gmra.mrb[0].mxu0 %v1046
        %v1116 = vpop.f32.mrb[0].mxu0
        %v1117 = vadd.f32 %v527, %v1116
        %v1118 = vpop.f32.mrb[0].mxu0
        %v1119 = vpop.f32.mrb[0].mxu0
        %v1120 = vadd.f32 %v527, %v1119
        %v1121 = vpop.f32.mrb[0].mxu0
        %1122 = vmatprep.mubr.bf16.mxu0 0
        %1123 = vmatmul.mubr.bf16.gmra.mrb[0].mxu0 %v1049
        %v1124 = vpop.f32.mrb[0].mxu0
        %v1125 = vadd.f32 %v527, %v1124
        %v1126 = vpop.f32.mrb[0].mxu0
        %v1127 = vpop.f32.mrb[0].mxu0
        %v1128 = vadd.f32 %v527, %v1127
        %v1129 = vpop.f32.mrb[0].mxu0
        %1130 = vmatprep.mubr.bf16.mxu0 0
        %1131 = vmatmul.mubr.bf16.gmra.mrb[0].mxu0 %v1052
        %v1132 = vpop.f32.mrb[0].mxu0
        %v1133 = vadd.f32 %v527, %v1132
        %v1134 = vpop.f32.mrb[0].mxu0
        %v1135 = vpop.f32.mrb[0].mxu0
        %v1136 = vadd.f32 %v527, %v1135
        %v1137 = vpop.f32.mrb[0].mxu0
        %1138 = vmatprep.mubr.bf16.mxu0 0
        %1139 = vmatmul.mubr.bf16.gmra.mrb[0].mxu0 %v1055
        %v1140 = vpop.f32.mrb[0].mxu0
        %v1141 = vadd.f32 %v527, %v1140
        %v1142 = vpop.f32.mrb[0].mxu0
        %v1143 = vpop.f32.mrb[0].mxu0
        %v1144 = vadd.f32 %v527, %v1143
        %v1145 = vpop.f32.mrb[0].mxu0
        %1146 = vmatprep.mubr.bf16.mxu0 0
        %1147 = vmatmul.mubr.bf16.gmra.mrb[0].mxu0 %v1058
        %v1148 = vpop.f32.mrb[0].mxu0
        %v1149 = vadd.f32 %v527, %v1148
        %v1150 = vpop.f32.mrb[0].mxu0
        %v1151 = vpop.f32.mrb[0].mxu0
        %v1152 = vadd.f32 %v527, %v1151
        %v1153 = vpop.f32.mrb[0].mxu0
        %1154 = vmatprep.mubr.bf16.mxu0 0
        %1155 = vmatmul.mubr.bf16.gmra.mrb[0].mxu0 %v1061
        %v1156 = vpop.f32.mrb[0].mxu0
        %v1157 = vadd.f32 %v527, %v1156
        %v1158 = vpop.f32.mrb[0].mxu0
        %v1159 = vpop.f32.mrb[0].mxu0
        %v1160 = vadd.f32 %v527, %v1159
        %v1161 = vpop.f32.mrb[0].mxu0
        %1162 = vmatprep.mubr.bf16.mxu0 0
        %1163 = vmatmul.mubr.bf16.gmra.mrb[0].mxu0 %v1064
        %v1164 = vpop.f32.mrb[0].mxu0
        %v1165 = vadd.f32 %v527, %v1164
        %v1166 = vpop.f32.mrb[0].mxu0
        %v1167 = vpop.f32.mrb[0].mxu0
        %v1168 = vadd.f32 %v527, %v1167
        %v1169 = vpop.f32.mrb[0].mxu0
        %1170 = vdwg.mxu0
        %v1171 = vtanh.pop %v1101
        %v1172 = vtanh.pop %v1104
        %v1173 = vtanh.pop %v1109
        %v1174 = vtanh.pop %v1112
        %v1175 = vtanh.pop %v1117
        %v1176 = vtanh.pop %v1120
        %v1177 = vtanh.pop %v1125
        %v1178 = vtanh.pop %v1128
        %v1179 = vtanh.pop %v1133
        %v1180 = vtanh.pop %v1136
        %v1181 = vtanh.pop %v1141
        %v1182 = vtanh.pop %v1144
        %v1183 = vtanh.pop %v1149
        %v1184 = vtanh.pop %v1152
        %v1185 = vtanh.pop %v1157
        %v1186 = vtanh.pop %v1160
        %v1187 = vtanh.pop %v1165
        %v1188 = vtanh.pop %v1168
        %v1189 = vadd.f32 %v957, %v1171
        %v1190 = vadd.f32 %v958, %v1172
        %v1191 = vadd.f32 %v959, %v1173
        %v1192 = vadd.f32 %v960, %v1174
        %v1193 = vadd.f32 %v961, %v1175
        %v1194 = vadd.f32 %v962, %v1176
        %v1195 = vadd.f32 %v963, %v1177
        %v1196 = vadd.f32 %v964, %v1178
        %v1197 = vadd.f32 %v965, %v1179
        %v1198 = vadd.f32 %v966, %v1180
        %v1199 = vadd.f32 %v967, %v1181
        %v1200 = vadd.f32 %v968, %v1182
        %v1201 = vadd.f32 %v969, %v1183
        %v1202 = vadd.f32 %v970, %v1184
        %v1203 = vadd.f32 %v971, %v1185
        %v1204 = vadd.f32 %v972, %v1186
        %v1205 = vadd.f32 %v973, %v1187
        %v1206 = vadd.f32 %v974, %v1188
        %s1207 = scalar_lea.vmem %s471, 216 [#allocation2]
        %v1208 = vld [vmem:[%s1207] sm:$0xf]
        %v1209 = vld [vmem:[%s1207 + $0x4] sm:$0xf]
        %v1210 = vld [vmem:[%s1207 + $0x8] sm:$0xf]
        %v1211 = vld [vmem:[%s1207 + $0xc] sm:$0xf]
        %v1212 = vld [vmem:[%s1207 + $0x10] sm:$0xf]
        %v1213 = vld [vmem:[%s1207 + $0x14] sm:$0xf]
        %v1214 = vld [vmem:[%s1207 + $0x18] sm:$0xf]
        %v1215 = vld [vmem:[%s1207 + $0x1c] sm:$0xf]
        %v1216 = vld [vmem:[%s1207 + $0x20] sm:$0xf]
        %v1217 = vld [vmem:[%s1207 + $0x24] sm:$0xf]
        %v1218 = vld [vmem:[%s1207 + $0x28] sm:$0xf]
        %v1219 = vld [vmem:[%s1207 + $0x2c] sm:$0xf]
        %v1220 = vld [vmem:[%s1207 + $0x30] sm:$0xf]
        %v1221 = vld [vmem:[%s1207 + $0x34] sm:$0xf]
        %v1222 = vld [vmem:[%s1207 + $0x38] sm:$0xf]
        %v1223 = vld [vmem:[%s1207 + $0x3c] sm:$0xf]
        %v1224 = vld [vmem:[%s1207 + $0x40] sm:$0xf]
        %v1225 = vld [vmem:[%s1207 + $0x44] sm:$0xf]
        %v1244 = vunpack.c.l.b16 %v1208
        %v1245 = vunpack.c.l.b16 %v1209
        %v1246 = vunpack.c.l.b16 %v1210
        %v1247 = vunpack.c.l.b16 %v1211
        %v1248 = vunpack.c.l.b16 %v1212
        %v1249 = vunpack.c.l.b16 %v1213
        %v1250 = vunpack.c.l.b16 %v1214
        %v1251 = vunpack.c.l.b16 %v1215
        %v1252 = vunpack.c.l.b16 %v1216
        %v1253 = vunpack.c.l.b16 %v1217
        %v1254 = vunpack.c.l.b16 %v1218
        %v1255 = vunpack.c.l.b16 %v1219
        %v1256 = vunpack.c.l.b16 %v1220
        %v1257 = vunpack.c.l.b16 %v1221
        %v1258 = vunpack.c.l.b16 %v1222
        %v1259 = vunpack.c.l.b16 %v1223
        %v1260 = vunpack.c.l.b16 %v1224
        %v1261 = vunpack.c.l.b16 %v1225
        %v1262 = vpack.c.b16 %v1245, %v1244
        %v1263 = vpack.c.b16 %v1247, %v1246
        %v1264 = vpack.c.b16 %v1249, %v1248
        %v1265 = vpack.c.b16 %v1251, %v1250
        %v1266 = vpack.c.b16 %v1253, %v1252
        %v1267 = vpack.c.b16 %v1255, %v1254
        %v1268 = vpack.c.b16 %v1257, %v1256
        %v1269 = vpack.c.b16 %v1259, %v1258
        %v1270 = vpack.c.b16 %v1261, %v1260
        %v1272 = vsel %vm585, %v1262, 0
        %v1275 = vsel %vm585, %v1263, 0
        %v1278 = vsel %vm585, %v1264, 0
        %v1281 = vsel %vm585, %v1265, 0
        %v1284 = vsel %vm585, %v1266, 0
        %v1287 = vsel %vm585, %v1267, 0
        %v1290 = vsel %vm585, %v1268, 0
        %v1293 = vsel %vm585, %v1269, 0
        %v1296 = vsel %vm585, %v1270, 0
        %1298 = vmatprep.subr.bf16.mxu0 0
        %1299 = vmatpush1.bf16.msra.mxu0 %v582
        %1300 = vmatprep.subr.bf16.mxu0 0
        %1301 = vmatpush1.bf16.msra.mxu0 %v618
        %1302 = vmatprep.subr.bf16.mxu0 0
        %1303 = vmatpush1.bf16.msra.mxu0 0
        %1304 = vmatprep.subr.bf16.mxu0 0
        %1305 = vmatpush1.bf16.msra.mxu0 0
        %1306 = vmatprep.subr.bf16.mxu0 0
        %1307 = vmatpush1.bf16.msra.mxu0 0
        %1308 = vmatprep.subr.bf16.mxu0 0
        %1309 = vmatpush1.bf16.msra.mxu0 0
        %1310 = vmatprep.subr.bf16.mxu0 0
        %1311 = vmatpush1.bf16.msra.mxu0 0
        %1312 = vmatprep.subr.bf16.mxu0 0
        %1313 = vmatpush1.bf16.msra.mxu0 0
        %1314 = vmatprep.subr.bf16.mxu0 0
        %1315 = vmatpush1.bf16.msra.mxu0 0
        %1316 = vmatprep.subr.bf16.mxu0 0
        %1317 = vmatpush1.bf16.msra.mxu0 0
        %1318 = vmatprep.subr.bf16.mxu0 0
        %1319 = vmatpush1.bf16.msra.mxu0 0
        %1320 = vmatprep.subr.bf16.mxu0 0
        %1321 = vmatpush1.bf16.msra.mxu0 0
        %1322 = vmatprep.subr.bf16.mxu0 0
        %1323 = vmatpush1.bf16.msra.mxu0 0
        %1324 = vmatprep.subr.bf16.mxu0 0
        %1325 = vmatpush1.bf16.msra.mxu0 0
        %1326 = vmatprep.subr.bf16.mxu0 0
        %1327 = vmatpush1.bf16.msra.mxu0 0
        %1328 = vmatprep.subr.bf16.mxu0 0
        %1329 = vmatpush1.bf16.msra.mxu0 0
        %1330 = vmatprep.mubr.bf16.mxu0 0
        %1331 = vmatmul.mubr.bf16.gmra.mrb[0].mxu0 %v1272
        %v1332 = vpop.f32.mrb[0].mxu0
        %v1333 = vadd.f32 %v527, %v1332
        %v1334 = vpop.f32.mrb[0].mxu0
        %v1335 = vpop.f32.mrb[0].mxu0
        %v1336 = vadd.f32 %v527, %v1335
        %v1337 = vpop.f32.mrb[0].mxu0
        %1338 = vmatprep.mubr.bf16.mxu0 0
        %1339 = vmatmul.mubr.bf16.gmra.mrb[0].mxu0 %v1275
        %v1340 = vpop.f32.mrb[0].mxu0
        %v1341 = vadd.f32 %v527, %v1340
        %v1342 = vpop.f32.mrb[0].mxu0
        %v1343 = vpop.f32.mrb[0].mxu0
        %v1344 = vadd.f32 %v527, %v1343
        %v1345 = vpop.f32.mrb[0].mxu0
        %1346 = vmatprep.mubr.bf16.mxu0 0
        %1347 = vmatmul.mubr.bf16.gmra.mrb[0].mxu0 %v1278
        %v1348 = vpop.f32.mrb[0].mxu0
        %v1349 = vadd.f32 %v527, %v1348
        %v1350 = vpop.f32.mrb[0].mxu0
        %v1351 = vpop.f32.mrb[0].mxu0
        %v1352 = vadd.f32 %v527, %v1351
        %v1353 = vpop.f32.mrb[0].mxu0
        %1354 = vmatprep.mubr.bf16.mxu0 0
        %1355 = vmatmul.mubr.bf16.gmra.mrb[0].mxu0 %v1281
        %v1356 = vpop.f32.mrb[0].mxu0
        %v1357 = vadd.f32 %v527, %v1356
        %v1358 = vpop.f32.mrb[0].mxu0
        %v1359 = vpop.f32.mrb[0].mxu0
        %v1360 = vadd.f32 %v527, %v1359
        %v1361 = vpop.f32.mrb[0].mxu0
        %1362 = vmatprep.mubr.bf16.mxu0 0
        %1363 = vmatmul.mubr.bf16.gmra.mrb[0].mxu0 %v1284
        %v1364 = vpop.f32.mrb[0].mxu0
        %v1365 = vadd.f32 %v527, %v1364
        %v1366 = vpop.f32.mrb[0].mxu0
        %v1367 = vpop.f32.mrb[0].mxu0
        %v1368 = vadd.f32 %v527, %v1367
        %v1369 = vpop.f32.mrb[0].mxu0
        %1370 = vmatprep.mubr.bf16.mxu0 0
        %1371 = vmatmul.mubr.bf16.gmra.mrb[0].mxu0 %v1287
        %v1372 = vpop.f32.mrb[0].mxu0
        %v1373 = vadd.f32 %v527, %v1372
        %v1374 = vpop.f32.mrb[0].mxu0
        %v1375 = vpop.f32.mrb[0].mxu0
        %v1376 = vadd.f32 %v527, %v1375
        %v1377 = vpop.f32.mrb[0].mxu0
        %1378 = vmatprep.mubr.bf16.mxu0 0
        %1379 = vmatmul.mubr.bf16.gmra.mrb[0].mxu0 %v1290
        %v1380 = vpop.f32.mrb[0].mxu0
        %v1381 = vadd.f32 %v527, %v1380
        %v1382 = vpop.f32.mrb[0].mxu0
        %v1383 = vpop.f32.mrb[0].mxu0
        %v1384 = vadd.f32 %v527, %v1383
        %v1385 = vpop.f32.mrb[0].mxu0
        %1386 = vmatprep.mubr.bf16.mxu0 0
        %1387 = vmatmul.mubr.bf16.gmra.mrb[0].mxu0 %v1293
        %v1388 = vpop.f32.mrb[0].mxu0
        %v1389 = vadd.f32 %v527, %v1388
        %v1390 = vpop.f32.mrb[0].mxu0
        %v1391 = vpop.f32.mrb[0].mxu0
        %v1392 = vadd.f32 %v527, %v1391
        %v1393 = vpop.f32.mrb[0].mxu0
        %1394 = vmatprep.mubr.bf16.mxu0 0
        %1395 = vmatmul.mubr.bf16.gmra.mrb[0].mxu0 %v1296
        %v1396 = vpop.f32.mrb[0].mxu0
        %v1397 = vadd.f32 %v527, %v1396
        %v1398 = vpop.f32.mrb[0].mxu0
        %v1399 = vpop.f32.mrb[0].mxu0
        %v1400 = vadd.f32 %v527, %v1399
        %v1401 = vpop.f32.mrb[0].mxu0
        %1402 = vdwg.mxu0
        %v1403 = vtanh.pop %v1333
        %v1404 = vtanh.pop %v1336
        %v1405 = vtanh.pop %v1341
        %v1406 = vtanh.pop %v1344
        %v1407 = vtanh.pop %v1349
        %v1408 = vtanh.pop %v1352
        %v1409 = vtanh.pop %v1357
        %v1410 = vtanh.pop %v1360
        %v1411 = vtanh.pop %v1365
        %v1412 = vtanh.pop %v1368
        %v1413 = vtanh.pop %v1373
        %v1414 = vtanh.pop %v1376
        %v1415 = vtanh.pop %v1381
        %v1416 = vtanh.pop %v1384
        %v1417 = vtanh.pop %v1389
        %v1418 = vtanh.pop %v1392
        %v1419 = vtanh.pop %v1397
        %v1420 = vtanh.pop %v1400
        %v1421 = vadd.f32 %v1189, %v1403
        %v1422 = vadd.f32 %v1190, %v1404
        %v1423 = vadd.f32 %v1191, %v1405
        %v1424 = vadd.f32 %v1192, %v1406
        %v1425 = vadd.f32 %v1193, %v1407
        %v1426 = vadd.f32 %v1194, %v1408
        %v1427 = vadd.f32 %v1195, %v1409
        %v1428 = vadd.f32 %v1196, %v1410
        %v1429 = vadd.f32 %v1197, %v1411
        %v1430 = vadd.f32 %v1198, %v1412
        %v1431 = vadd.f32 %v1199, %v1413
        %v1432 = vadd.f32 %v1200, %v1414
        %v1433 = vadd.f32 %v1201, %v1415
        %v1434 = vadd.f32 %v1202, %v1416
        %v1435 = vadd.f32 %v1203, %v1417
        %v1436 = vadd.f32 %v1204, %v1418
        %v1437 = vadd.f32 %v1205, %v1419
        %v1438 = vadd.f32 %v1206, %v1420
        %v1439 = vmul.f32 %v1421, 0.25
        %v1440 = vmul.f32 %v1422, 0.25
        %v1441 = vmul.f32 %v1423, 0.25
        %v1442 = vmul.f32 %v1424, 0.25
        %v1443 = vmul.f32 %v1425, 0.25
        %v1444 = vmul.f32 %v1426, 0.25
        %v1445 = vmul.f32 %v1427, 0.25
        %v1446 = vmul.f32 %v1428, 0.25
        %v1447 = vmul.f32 %v1429, 0.25
        %v1448 = vmul.f32 %v1430, 0.25
        %v1449 = vmul.f32 %v1431, 0.25
        %v1450 = vmul.f32 %v1432, 0.25
        %v1451 = vmul.f32 %v1433, 0.25
        %v1452 = vmul.f32 %v1434, 0.25
        %v1453 = vmul.f32 %v1435, 0.25
        %v1454 = vmul.f32 %v1436, 0.25
        %v1455 = vmul.f32 %v1437, 0.25
        %v1456 = vmul.f32 %v1438, 0.25
        %v1457 = vpack.c.bf16 %v1440, %v1439
        %v1458 = vpack.c.bf16 %v1442, %v1441
        %v1459 = vpack.c.bf16 %v1444, %v1443
        %v1460 = vpack.c.bf16 %v1446, %v1445
        %v1461 = vpack.c.bf16 %v1448, %v1447
        %v1462 = vpack.c.bf16 %v1450, %v1449
        %v1463 = vpack.c.bf16 %v1452, %v1451
        %v1464 = vpack.c.bf16 %v1454, %v1453
        %v1465 = vpack.c.bf16 %v1456, %v1455
        %v1475 = vunpack.c.l.b16 %v1457
        %v1476 = vunpack.c.h.b16 %v1457
        %v1477 = vunpack.c.l.b16 %v1458
        %v1478 = vunpack.c.h.b16 %v1458
        %v1479 = vunpack.c.l.b16 %v1459
        %v1480 = vunpack.c.h.b16 %v1459
        %v1481 = vunpack.c.l.b16 %v1460
        %v1482 = vunpack.c.h.b16 %v1460
        %v1483 = vunpack.c.l.b16 %v1461
        %v1484 = vunpack.c.h.b16 %v1461
        %v1485 = vunpack.c.l.b16 %v1462
        %v1486 = vunpack.c.h.b16 %v1462
        %v1487 = vunpack.c.l.b16 %v1463
        %v1488 = vunpack.c.h.b16 %v1463
        %v1489 = vunpack.c.l.b16 %v1464
        %v1490 = vunpack.c.h.b16 %v1464
        %v1491 = vunpack.c.l.b16 %v1465
        %v1492 = vunpack.c.h.b16 %v1465
        %v1493 = vpack.c.b16 %v1475, %v1475
        %v1494 = vpack.c.b16 %v1476, %v1476
        %v1495 = vpack.c.b16 %v1477, %v1477
        %v1496 = vpack.c.b16 %v1478, %v1478
        %v1497 = vpack.c.b16 %v1479, %v1479
        %v1498 = vpack.c.b16 %v1480, %v1480
        %v1499 = vpack.c.b16 %v1481, %v1481
        %v1500 = vpack.c.b16 %v1482, %v1482
        %v1501 = vpack.c.b16 %v1483, %v1483
        %v1502 = vpack.c.b16 %v1484, %v1484
        %v1503 = vpack.c.b16 %v1485, %v1485
        %v1504 = vpack.c.b16 %v1486, %v1486
        %v1505 = vpack.c.b16 %v1487, %v1487
        %v1506 = vpack.c.b16 %v1488, %v1488
        %v1507 = vpack.c.b16 %v1489, %v1489
        %v1508 = vpack.c.b16 %v1490, %v1490
        %v1509 = vpack.c.b16 %v1491, %v1491
        %v1510 = vpack.c.b16 %v1492, %v1492
        %vm1529 = vcmask 44032
        %1530 = vst.msk [vmem:[%s497] sm:$0xf] %vm1529, %v1493
        %1531 = vst.msk [vmem:[%s497 + $0x4] sm:$0xf] %vm1529, %v1494
        %1532 = vst.msk [vmem:[%s497 + $0x8] sm:$0xf] %vm1529, %v1495
        %1533 = vst.msk [vmem:[%s497 + $0xc] sm:$0xf] %vm1529, %v1496
        %1534 = vst.msk [vmem:[%s497 + $0x10] sm:$0xf] %vm1529, %v1497
        %1535 = vst.msk [vmem:[%s497 + $0x14] sm:$0xf] %vm1529, %v1498
        %1536 = vst.msk [vmem:[%s497 + $0x18] sm:$0xf] %vm1529, %v1499
        %1537 = vst.msk [vmem:[%s497 + $0x1c] sm:$0xf] %vm1529, %v1500
        %1538 = vst.msk [vmem:[%s497 + $0x20] sm:$0xf] %vm1529, %v1501
        %1539 = vst.msk [vmem:[%s497 + $0x24] sm:$0xf] %vm1529, %v1502
        %1540 = vst.msk [vmem:[%s497 + $0x28] sm:$0xf] %vm1529, %v1503
        %1541 = vst.msk [vmem:[%s497 + $0x2c] sm:$0xf] %vm1529, %v1504
        %1542 = vst.msk [vmem:[%s497 + $0x30] sm:$0xf] %vm1529, %v1505
        %1543 = vst.msk [vmem:[%s497 + $0x34] sm:$0xf] %vm1529, %v1506
        %1544 = vst.msk [vmem:[%s497 + $0x38] sm:$0xf] %vm1529, %v1507
        %1545 = vst.msk [vmem:[%s497 + $0x3c] sm:$0xf] %vm1529, %v1508
        %1546 = vst.msk [vmem:[%s497 + $0x40] sm:$0xf] %vm1529, %v1509
        %1547 = vst.msk [vmem:[%s497 + $0x44] sm:$0xf] %vm1529, %v1510
        %s1548 = smul.u32 18, %s14
        %p1549 = scmp.lt.s32.totalorder %s1548, 35
        %s1550 = scalar_select %p1549, %s1548, 35
        %s1551 = smul.addr %s1550, 4
        %s1552 = scalar_lea.vmem %s3, %s1551
        // Predicated region
        $region74: #{lenet5_forward.3} parent=68 // pred_check
          %p1553 = pneg %p100
        $region75: #{lenet5_forward.3} parent=68 // pred_check_branch
          %1555 = sbr.rel (%p1553) target = $region77
        $region76: #{lenet5_forward.3} parent=68 // pred_region
          %s1556 = smul.u32 18, %s14
        $region77: #{lenet5_forward.3} parent=68 // pred_fallthru
          _
      $region69: #{lenet5_forward.3} parent=5 // pred_fallthru
        _
      %p1557 = scmp.le.s32.totalorder 2, %s9
      // Predicated region
      $region78: #{lenet5_forward.3} parent=5 // pred_check
        %p1558 = pneg %p1557
      $region79: #{lenet5_forward.3} parent=5 // pred_check_branch
        %1560 = sbr.rel (%p1558) target = $region81
      $region80: #{lenet5_forward.3} parent=5 // pred_region
        %s1561 = ssub.s32 %s9, 2
        // Predicated region
        $region82: #{lenet5_forward.3} parent=80 // pred_check
          %p1562 = pneg %p106
        $region83: #{lenet5_forward.3} parent=80 // pred_check_branch
          %1564 = sbr.rel (%p1562) target = $region85
        $region84: #{lenet5_forward.3} parent=80 // pred_region
          %s1565 = smul.u32 18, %s15
          %p1566 = scmp.lt.s32.totalorder %s1565, 35
          %s1567 = scalar_select %p1566, %s1565, 35
          %s1568 = smul.addr %s1567, 4
          %s1569 = scalar_lea.vmem %s3, %s1568
        $region85: #{lenet5_forward.3} parent=80 // pred_fallthru
          _
      $region81: #{lenet5_forward.3} parent=5 // pred_fallthru
        _
    $region6: #{lenet5_forward.3} parent=1 // loop_footer
      %s13 = sadd.s32 1, %s9
    $region7: #{lenet5_forward.3} parent=1 // loop_footer_branch
      %8 = sbr.rel target = $region3
    $region8: #{lenet5_forward.3} parent=1 // loop_exit
      _

// kernel: lenet5_forward.4
$region0: #{lenet5_forward.4}
  #allocation0 [shape = 'u32[]', space=smem, size = 0x4, offset = 0x4, fixed_abs, tag = 'smem constant byte address 0x4 - core index']
  #allocation1 [shape = 'u32[144,128]{1,0:T(1,128)}', space=vmem, size = 0x12000, scoped, tag = 'internal scratch']
  %s0 = inlined_call_operand.vmem [shape: bf16[4,32,150], index: 0, kind: input, shape index: {}]
  %s1 = inlined_call_operand.vmem [shape: bf16[150,16], index: 1, kind: input, shape index: {}]
  %s2 = inlined_call_operand.vmem [shape: f32[1,16], index: 2, kind: input, shape index: {}]
  %s3 = inlined_call_operand.vmem [shape: bf16[32,16], index: 3, kind: output, shape index: {}]
  %s4 = sld [smem:[#allocation0]]
  $region83: #{lenet5_forward.4} parent=0
    _
  %s6 = ssub.s32 1, %s4
  %s7 = scalar_select 0, %s6, %s4
  $region1: #{lenet5_forward.4} parent=0
    #allocation2 [shape = 'u8[65536]{0}', space=vmem, size = 0x10000, scoped, tag = 'input window, operand 0']
    loop: start=0, step=1, limit=4
    $region2: #{lenet5_forward.4} parent=1 // loop_pre_header
      _
    $region3: #{lenet5_forward.4} parent=1 // loop_header
      %s9 = sphi 0, %s13
      %p10 = scmp.ge.s32.totalorder %s9, 4
      %s19 = sphi 0, %s21
      %s22 = sphi 0, %s19
      %s23 = sphi 0, %s22
      %s39 = sphi 0, %s23
      %s43 = sphi 0, %s43
      %s45 = sphi 0, %s43
      %s46 = sphi 0, %s45
      %s60 = sphi 0, %s46
      %s64 = sphi 0, %s64
      %s66 = sphi 0, %s64
      %s67 = sphi 0, %s66
      %s81 = sphi 0, %s67
      %s87 = sphi 0, %s89
      %s90 = sphi 0, %s87
      %s91 = sphi 0, %s90
      %s107 = sphi 0, %s91
    $region4: #{lenet5_forward.4} parent=1 // loop_header_branch
      %12 = sbr.rel (%p10) target = $region8
    $region5: #{lenet5_forward.4} parent=1 // loop_body
      %s14 = ssub.s32 %s9, 1
      %s15 = ssub.s32 %s9, 2
      %s16 = sadd.s32 %s9, 1
      %s17 = ssub.s32 %s9, %s16
      %p18 = scmp.eq.s32.totalorder %s17, 0
      %s20 = sadd.s32 %s19, 1
      %s21 = scalar_select %p18, %s19, %s20
      %p24 = pneg %p18
      %p25 = scmp.eq.s32.totalorder %s9, 1
      %p26 = por %p24, %p25
      %p27 = scmp.ne.s32.totalorder %s19, %s22
      %p28 = scmp.eq.s32.totalorder %s9, 0
      %p29 = por %p27, %p28
      %p30 = scmp.ne.s32.totalorder %s19, %s22
      %p31 = scmp.eq.s32.totalorder %s14, 1
      %p32 = por %p30, %p31
      %p33 = scmp.ne.s32.totalorder %s22, %s23
      %p34 = scmp.eq.s32.totalorder %s14, 0
      %p35 = por %p33, %p34
      %p36 = scmp.ne.s32.totalorder %s22, %s23
      %p37 = scmp.eq.s32.totalorder %s15, 1
      %p38 = por %p36, %p37
      %p40 = scmp.ne.s32.totalorder %s23, %s39
      %p41 = scmp.eq.s32.totalorder %s15, 0
      %p42 = por %p40, %p41
      %s44 = sadd.s32 %s43, 1
      %p47 = scmp.eq.s32.totalorder %s9, 1
      %p48 = scmp.ne.s32.totalorder %s43, %s45
      %p49 = scmp.eq.s32.totalorder %s9, 0
      %p50 = por %p48, %p49
      %p51 = scmp.ne.s32.totalorder %s43, %s45
      %p52 = scmp.eq.s32.totalorder %s14, 1
      %p53 = por %p51, %p52
      %p54 = scmp.ne.s32.totalorder %s45, %s46
      %p55 = scmp.eq.s32.totalorder %s14, 0
      %p56 = por %p54, %p55
      %p57 = scmp.ne.s32.totalorder %s45, %s46
      %p58 = scmp.eq.s32.totalorder %s15, 1
      %p59 = por %p57, %p58
      %p61 = scmp.ne.s32.totalorder %s46, %s60
      %p62 = scmp.eq.s32.totalorder %s15, 0
      %p63 = por %p61, %p62
      %s65 = sadd.s32 %s64, 1
      %p68 = scmp.eq.s32.totalorder %s9, 1
      %p69 = scmp.ne.s32.totalorder %s64, %s66
      %p70 = scmp.eq.s32.totalorder %s9, 0
      %p71 = por %p69, %p70
      %p72 = scmp.ne.s32.totalorder %s64, %s66
      %p73 = scmp.eq.s32.totalorder %s14, 1
      %p74 = por %p72, %p73
      %p75 = scmp.ne.s32.totalorder %s66, %s67
      %p76 = scmp.eq.s32.totalorder %s14, 0
      %p77 = por %p75, %p76
      %p78 = scmp.ne.s32.totalorder %s66, %s67
      %p79 = scmp.eq.s32.totalorder %s15, 1
      %p80 = por %p78, %p79
      %p82 = scmp.ne.s32.totalorder %s67, %s81
      %p83 = scmp.eq.s32.totalorder %s15, 0
      %p84 = por %p82, %p83
      %s85 = ssub.s32 %s9, %s16
      %p86 = scmp.eq.s32.totalorder %s85, 0
      %s88 = sadd.s32 %s87, 1
      %s89 = scalar_select %p86, %s87, %s88
      %p92 = pneg %p86
      %p93 = scmp.eq.s32.totalorder %s9, 1
      %p94 = por %p92, %p93
      %p95 = scmp.ne.s32.totalorder %s87, %s90
      %p96 = scmp.eq.s32.totalorder %s9, 0
      %p97 = por %p95, %p96
      %p98 = scmp.ne.s32.totalorder %s87, %s90
      %p99 = scmp.eq.s32.totalorder %s14, 1
      %p100 = por %p98, %p99
      %p101 = scmp.ne.s32.totalorder %s90, %s91
      %p102 = scmp.eq.s32.totalorder %s14, 0
      %p103 = por %p101, %p102
      %p104 = scmp.ne.s32.totalorder %s90, %s91
      %p105 = scmp.eq.s32.totalorder %s15, 1
      %p106 = por %p104, %p105
      %p108 = scmp.ne.s32.totalorder %s91, %s107
      %p109 = scmp.eq.s32.totalorder %s15, 0
      %p110 = por %p108, %p109
      %p111 = scmp.le.s32.totalorder 1, %s9
      %p112 = scmp.lt.s32.totalorder %s9, 3
      %p113 = pnand %p111, %p112
      %p114 = pneg %p113
      // Predicated region
      $region9: #{lenet5_forward.4} parent=5 // pred_check
        _
      $region10: #{lenet5_forward.4} parent=5 // pred_check_branch
        %116 = sbr.rel (%p113) target = $region12
      $region11: #{lenet5_forward.4} parent=5 // pred_region
        %s117 = ssub.s32 %s9, 1
        // Predicated region
        $region13: #{lenet5_forward.4} parent=11 // pred_check
          %p118 = pneg %p56
        $region14: #{lenet5_forward.4} parent=11 // pred_check_branch
          %120 = sbr.rel (%p118) target = $region16
        $region15: #{lenet5_forward.4} parent=11 // pred_region
          _
        $region16: #{lenet5_forward.4} parent=11 // pred_fallthru
          _
        // Predicated region
        $region17: #{lenet5_forward.4} parent=11 // pred_check
          %p121 = pneg %p77
        $region18: #{lenet5_forward.4} parent=11 // pred_check_branch
          %123 = sbr.rel (%p121) target = $region20
        $region19: #{lenet5_forward.4} parent=11 // pred_region
          _
        $region20: #{lenet5_forward.4} parent=11 // pred_fallthru
          _
      $region12: #{lenet5_forward.4} parent=5 // pred_fallthru
        _
      %p124 = scmp.lt.s32.totalorder %s9, 2
      // Predicated region
      $region21: #{lenet5_forward.4} parent=5 // pred_check
        %p125 = pneg %p124
      $region22: #{lenet5_forward.4} parent=5 // pred_check_branch
        %127 = sbr.rel (%p125) target = $region24
      $region23: #{lenet5_forward.4} parent=5 // pred_region
        // Predicated region
        $region25: #{lenet5_forward.4} parent=23 // pred_check
          %p128 = pneg %p29
        $region26: #{lenet5_forward.4} parent=23 // pred_check_branch
          %130 = sbr.rel (%p128) target = $region28
        $region27: #{lenet5_forward.4} parent=23 // pred_region
          %s131 = sand.u32 %s19, 1
          %s132 = sand.u32 %s19, 1
          %s133 = smul.addr %s132, 64
          %s134 = scalar_lea.vmem [#allocation2], %s133
          %s135 = smul.u32 2, %s9
          %s136 = smul.addr %s135, 2
          %s137 = smul.addr %s136, 4
          %s138 = scalar_lea.vmem %s0, %s137
          // Predicated region
          $region29: #{lenet5_forward.4} parent=27 // pred_check
            _
          $region30: #{lenet5_forward.4} parent=27 // pred_check_branch
            %140 = sbr.rel (0) target = $region32
          $region31: #{lenet5_forward.4} parent=27 // pred_region
            // Predicated region
            $region33: #{lenet5_forward.4} parent=31 // pred_check
              _
            $region34: #{lenet5_forward.4} parent=31 // pred_check_branch
              %142 = sbr.rel (0) target = $region36
            $region35: #{lenet5_forward.4} parent=31 // pred_region
              // Predicated region
              $region48: #{lenet5_forward.4} parent=35 // pred_check
                _
              $region49: #{lenet5_forward.4} parent=35 // pred_check_branch
                %171 = sbr.rel (0) target = $region51
              $region50: #{lenet5_forward.4} parent=35 // pred_region
                loop: start=0, step=1, limit=1
                $region52: #{lenet5_forward.4} parent=50 // loop_pre_header
                  _
                $region53: #{lenet5_forward.4} parent=50 // loop_header
                  %s173 = sphi 0, %s177
                  %p174 = scmp.ge.s32.totalorder %s173, 1
                  %s178 = sphi %s138, %s138
                  %s179 = sphi %s134, %s134
                $region54: #{lenet5_forward.4} parent=50 // loop_header_branch
                  %176 = sbr.rel (%p174) target = $region58
                $region55: #{lenet5_forward.4} parent=50 // loop_body
                  %v180 = vld [vmem:[%s178] sm:$0xff]
                  %181 = vst [vmem:[%s179] sm:$0xff] %v180
                  %v182 = vld [vmem:[%s178 + $0x8] sm:$0xff]
                  %183 = vst [vmem:[%s179 + $0x8] sm:$0xff] %v182
                  %v184 = vld [vmem:[%s178 + $0x20] sm:$0xff]
                  %185 = vst [vmem:[%s179 + $0x10] sm:$0xff] %v184
                  %v186 = vld [vmem:[%s178 + $0x28] sm:$0xff]
                  %187 = vst [vmem:[%s179 + $0x18] sm:$0xff] %v186
                  %v188 = vld [vmem:[%s178 + $0x40] sm:$0xff]
                  %189 = vst [vmem:[%s179 + $0x20] sm:$0xff] %v188
                  %v190 = vld [vmem:[%s178 + $0x48] sm:$0xff]
                  %191 = vst [vmem:[%s179 + $0x28] sm:$0xff] %v190
                  %v192 = vld [vmem:[%s178 + $0x60] sm:$0xff]
                  %193 = vst [vmem:[%s179 + $0x30] sm:$0xff] %v192
                  %v194 = vld [vmem:[%s178 + $0x68] sm:$0xff]
                  %195 = vst [vmem:[%s179 + $0x38] sm:$0xff] %v194
                $region56: #{lenet5_forward.4} parent=50 // loop_footer
                  %s177 = sadd.s32 1, %s173
                $region57: #{lenet5_forward.4} parent=50 // loop_footer_branch
                  %172 = sbr.rel target = $region53
                $region58: #{lenet5_forward.4} parent=50 // loop_exit
                  _
              $region51: #{lenet5_forward.4} parent=35 // pred_fallthru
                _
              // Predicated region
              $region59: #{lenet5_forward.4} parent=35 // pred_check
                _
              $region60: #{lenet5_forward.4} parent=35 // pred_check_branch
                %197 = sbr.rel target = $region62
              $region61: #{lenet5_forward.4} parent=35 // pred_region
                _
              $region62: #{lenet5_forward.4} parent=35 // pred_fallthru
                _
            $region36: #{lenet5_forward.4} parent=31 // pred_fallthru
              _
            // Predicated region
            $region37: #{lenet5_forward.4} parent=31 // pred_check
              _
            $region38: #{lenet5_forward.4} parent=31 // pred_check_branch
              %144 = sbr.rel target = $region40
            $region39: #{lenet5_forward.4} parent=31 // pred_region
              loop: start=0, step=1, limit=1
              $region41: #{lenet5_forward.4} parent=39 // loop_pre_header
                _
              $region42: #{lenet5_forward.4} parent=39 // loop_header
                %s147 = sphi 0, %s151
                %p148 = scmp.ge.s32.totalorder %s147, 1
                %s152 = sphi %s138, %s138
                %s153 = sphi %s134, %s134
              $region43: #{lenet5_forward.4} parent=39 // loop_header_branch
                %150 = sbr.rel (%p148) target = $region47
              $region44: #{lenet5_forward.4} parent=39 // loop_body
                %v154 = vld [vmem:[%s152] sm:$0xff]
                %155 = vst [vmem:[%s153] sm:$0xff] %v154
                %v156 = vld [vmem:[%s152 + $0x8] sm:$0xff]
                %157 = vst [vmem:[%s153 + $0x8] sm:$0xff] %v156
                %v158 = vld [vmem:[%s152 + $0x20] sm:$0xff]
                %159 = vst [vmem:[%s153 + $0x10] sm:$0xff] %v158
                %v160 = vld [vmem:[%s152 + $0x28] sm:$0xff]
                %161 = vst [vmem:[%s153 + $0x18] sm:$0xff] %v160
                %v162 = vld [vmem:[%s152 + $0x40] sm:$0xff]
                %163 = vst [vmem:[%s153 + $0x20] sm:$0xff] %v162
                %v164 = vld [vmem:[%s152 + $0x48] sm:$0xff]
                %165 = vst [vmem:[%s153 + $0x28] sm:$0xff] %v164
                %v166 = vld [vmem:[%s152 + $0x60] sm:$0xff]
                %167 = vst [vmem:[%s153 + $0x30] sm:$0xff] %v166
                %v168 = vld [vmem:[%s152 + $0x68] sm:$0xff]
                %169 = vst [vmem:[%s153 + $0x38] sm:$0xff] %v168
              $region45: #{lenet5_forward.4} parent=39 // loop_footer
                %s151 = sadd.s32 1, %s147
              $region46: #{lenet5_forward.4} parent=39 // loop_footer_branch
                %146 = sbr.rel target = $region42
              $region47: #{lenet5_forward.4} parent=39 // loop_exit
                _
            $region40: #{lenet5_forward.4} parent=31 // pred_fallthru
              _
          $region32: #{lenet5_forward.4} parent=27 // pred_fallthru
            _
          %198 = vnop
        $region28: #{lenet5_forward.4} parent=23 // pred_fallthru
          _
      $region24: #{lenet5_forward.4} parent=5 // pred_fallthru
        _
      %p199 = scmp.le.s32.totalorder 1, %s9
      %p200 = scmp.lt.s32.totalorder %s9, 3
      %p201 = pnand %p199, %p200
      %p202 = pneg %p201
      // Predicated region
      $region63: #{lenet5_forward.4} parent=5 // pred_check
        _
      $region64: #{lenet5_forward.4} parent=5 // pred_check_branch
        %204 = sbr.rel (%p201) target = $region66
      $region65: #{lenet5_forward.4} parent=5 // pred_region
        %s205 = ssub.s32 %s9, 1
        %s206 = sand.u32 %s22, 1
        %s207 = sand.u32 %s22, 1
        %s208 = smul.addr %s207, 64
        %s209 = scalar_lea.vmem [#allocation2], %s208
        // Predicated region
        $region67: #{lenet5_forward.4} parent=65 // pred_check
          %p210 = pneg %p35
        $region68: #{lenet5_forward.4} parent=65 // pred_check_branch
          %212 = sbr.rel (%p210) target = $region70
        $region69: #{lenet5_forward.4} parent=65 // pred_region
          _
        $region70: #{lenet5_forward.4} parent=65 // pred_fallthru
          _
        %s213 = sand.u32 %s22, 1
        %s214 = sand.u32 %s22, 1
        %s215 = smul.addr %s214, 64
        %s216 = scalar_lea.vmem [#allocation2], %s215
        %p217 = pneg %p35
        %p218 = pneg %p32
        %p219 = pneg %p56
        %p220 = pneg %p53
        %p221 = pneg %p77
        %p222 = pneg %p74
        %p223 = pneg %p103
        %p224 = pneg %p100
        %s225 = smul.u32 2, %s14
        %p226 = scmp.lt.s32.totalorder %s225, 3
        %s227 = scalar_select %p226, %s225, 3
        %s228 = smul.addr %s227, 4
        %s229 = scalar_lea.vmem %s3, %s228
        %s230 = smul.u32 2, %s14
        %s231 = smul.u32 2, %s14
        %p232 = scmp.lt.s32.totalorder %s231, 3
        %s233 = scalar_select %p232, %s231, 3
        %s234 = smul.addr %s233, 4
        %s235 = scalar_lea.vmem %s3, %s234
        %s236 = smul.u32 2, %s14
        %v238 = vld [vmem:[%s1] sm:$0xf]
        %v239 = vld [vmem:[%s1 + $0x4] sm:$0xf]
        %v240 = vld [vmem:[%s1 + $0x8] sm:$0xf]
        %v241 = vld [vmem:[%s1 + $0xc] sm:$0xf]
        %v242 = vld [vmem:[%s1 + $0x10] sm:$0xf]
        %v243 = vld [vmem:[%s1 + $0x14] sm:$0xf]
        %v244 = vld [vmem:[%s1 + $0x18] sm:$0xf]
        %v245 = vld [vmem:[%s1 + $0x1c] sm:$0xf]
        %v246 = vld [vmem:[%s1 + $0x20] sm:$0xf]
        %v247 = vld [vmem:[%s1 + $0x24] sm:$0xf]
        %v248 = vld [vmem:[%s1 + $0x28] sm:$0xf]
        %v249 = vld [vmem:[%s1 + $0x2c] sm:$0xf]
        %v250 = vld [vmem:[%s1 + $0x30] sm:$0xf]
        %v251 = vld [vmem:[%s1 + $0x34] sm:$0xf]
        %v252 = vld [vmem:[%s1 + $0x38] sm:$0xf]
        %v253 = vld [vmem:[%s1 + $0x3c] sm:$0xf]
        %v254 = vld [vmem:[%s1 + $0x40] sm:$0xf]
        %v255 = vld [vmem:[%s1 + $0x44] sm:$0xf]
        %v256 = vld [vmem:[%s1 + $0x48] sm:$0x7]
        %v257 = vld [vmem:[%s2] sm:$0x1]
        %v258 = vld [vmem:[%s209] sm:$0xff]
        %v259 = vld [vmem:[%s209 + $0x8] sm:$0xff]
        %v261 = vlaneseq
        %v262 = vshrl.u32 %v261, 7
        %v263 = vsub.s32 0, %v262
        %v264 = vrot.slane %v257, %v263
        %v268 = vunpack.c.l.b16 %v258
        %v269 = vunpack.c.h.b16 %v258
        %v270 = vunpack.c.l.b16 %v259
        %v271 = vunpack.c.h.b16 %v259
        %v272 = vpack.c.b16 %v270, %v268
        %v273 = vpack.c.b16 %v271, %v269
        %v294 = vunpack.c.l.b16 %v238
        %v295 = vunpack.c.l.b16 %v239
        %v296 = vunpack.c.l.b16 %v240
        %v297 = vunpack.c.l.b16 %v241
        %v298 = vunpack.c.l.b16 %v242
        %v299 = vunpack.c.l.b16 %v243
        %v300 = vunpack.c.l.b16 %v244
        %v301 = vunpack.c.l.b16 %v245
        %v302 = vunpack.c.l.b16 %v246
        %v303 = vunpack.c.l.b16 %v247
        %v304 = vunpack.c.l.b16 %v248
        %v305 = vunpack.c.l.b16 %v249
        %v306 = vunpack.c.l.b16 %v250
        %v307 = vunpack.c.l.b16 %v251
        %v308 = vunpack.c.l.b16 %v252
        %v309 = vunpack.c.l.b16 %v253
        %v310 = vunpack.c.l.b16 %v254
        %v311 = vunpack.c.l.b16 %v255
        %v312 = vunpack.c.l.b16 %v256
        %v313 = vpack.c.b16 %v295, %v294
        %v314 = vpack.c.b16 %v297, %v296
        %v315 = vpack.c.b16 %v299, %v298
        %v316 = vpack.c.b16 %v301, %v300
        %v317 = vpack.c.b16 %v303, %v302
        %v318 = vpack.c.b16 %v305, %v304
        %v319 = vpack.c.b16 %v307, %v306
        %v320 = vpack.c.b16 %v309, %v308
        %v321 = vpack.c.b16 %v311, %v310
        %v322 = vpack.c.b16 %v312, %v312
        %vm332 = vcmask 179200
        %v334 = vsel %vm332, %v273, 0
        %vm336 = vcmask 1042432
        %v338 = vsel %vm336, %v322, 0
        %340 = vmatprep.subr.bf16.mxu0 0
        %341 = vmatpush1.bf16.msra.mxu0 %v313
        %342 = vmatprep.subr.bf16.mxu0 0
        %343 = vmatpush1.bf16.msra.mxu0 %v314
        %344 = vmatprep.subr.bf16.mxu0 0
        %345 = vmatpush1.bf16.msra.mxu0 %v315
        %346 = vmatprep.subr.bf16.mxu0 0
        %347 = vmatpush1.bf16.msra.mxu0 %v316
        %348 = vmatprep.subr.bf16.mxu0 0
        %349 = vmatpush1.bf16.msra.mxu0 %v317
        %350 = vmatprep.subr.bf16.mxu0 0
        %351 = vmatpush1.bf16.msra.mxu0 %v318
        %352 = vmatprep.subr.bf16.mxu0 0
        %353 = vmatpush1.bf16.msra.mxu0 %v319
        %354 = vmatprep.subr.bf16.mxu0 0
        %355 = vmatpush1.bf16.msra.mxu0 %v320
        %356 = vmatprep.subr.bf16.mxu0 0
        %357 = vmatpush1.bf16.msra.mxu0 %v321
        %358 = vmatprep.subr.bf16.mxu0 0
        %359 = vmatpush1.bf16.msra.mxu0 %v338
        %360 = vmatprep.subr.bf16.mxu0 0
        %361 = vmatpush1.bf16.msra.mxu0 0
        %362 = vmatprep.subr.bf16.mxu0 0
        %363 = vmatpush1.bf16.msra.mxu0 0
        %364 = vmatprep.subr.bf16.mxu0 0
        %365 = vmatpush1.bf16.msra.mxu0 0
        %366 = vmatprep.subr.bf16.mxu0 0
        %367 = vmatpush1.bf16.msra.mxu0 0
        %368 = vmatprep.subr.bf16.mxu0 0
        %369 = vmatpush1.bf16.msra.mxu0 0
        %370 = vmatprep.subr.bf16.mxu0 0
        %371 = vmatpush1.bf16.msra.mxu0 0
        %372 = vmatprep.mubr.bf16.mxu0 %v334
        %373 = vmatmul.mubr.bf16.gmra.mrb[0].mxu0 %v272
        %v374 = vpop.f32.mrb[0].mxu0
        %v375 = vadd.f32 %v264, %v374
        %v376 = vpop.f32.mrb[0].mxu0
        %v377 = vpop.f32.mrb[0].mxu0
        %v378 = vadd.f32 %v264, %v377
        %v379 = vpop.f32.mrb[0].mxu0
        %380 = vdwg.mxu0
        %v381 = vtanh.pop %v375
        %v382 = vtanh.pop %v378
        %s383 = scalar_lea.vmem %s209, 16 [#allocation2]
        %v384 = vld [vmem:[%s383] sm:$0xff]
        %v385 = vld [vmem:[%s383 + $0x8] sm:$0xff]
        %v388 = vunpack.c.l.b16 %v384
        %v389 = vunpack.c.h.b16 %v384
        %v390 = vunpack.c.l.b16 %v385
        %v391 = vunpack.c.h.b16 %v385
        %v392 = vpack.c.b16 %v390, %v388
        %v393 = vpack.c.b16 %v391, %v389
        %v396 = vsel %vm332, %v393, 0
        %398 = vmatprep.subr.bf16.mxu0 0
        %399 = vmatpush1.bf16.msra.mxu0 %v313
        %400 = vmatprep.subr.bf16.mxu0 0
        %401 = vmatpush1.bf16.msra.mxu0 %v314
        %402 = vmatprep.subr.bf16.mxu0 0
        %403 = vmatpush1.bf16.msra.mxu0 %v315
        %404 = vmatprep.subr.bf16.mxu0 0
        %405 = vmatpush1.bf16.msra.mxu0 %v316
        %406 = vmatprep.subr.bf16.mxu0 0
        %407 = vmatpush1.bf16.msra.mxu0 %v317
        %408 = vmatprep.subr.bf16.mxu0 0
        %409 = vmatpush1.bf16.msra.mxu0 %v318
        %410 = vmatprep.subr.bf16.mxu0 0
        %411 = vmatpush1.bf16.msra.mxu0 %v319
        %412 = vmatprep.subr.bf16.mxu0 0
        %413 = vmatpush1.bf16.msra.mxu0 %v320
        %414 = vmatprep.subr.bf16.mxu0 0
        %415 = vmatpush1.bf16.msra.mxu0 %v321
        %416 = vmatprep.subr.bf16.mxu0 0
        %417 = vmatpush1.bf16.msra.mxu0 %v338
        %418 = vmatprep.subr.bf16.mxu0 0
        %419 = vmatpush1.bf16.msra.mxu0 0
        %420 = vmatprep.subr.bf16.mxu0 0
        %421 = vmatpush1.bf16.msra.mxu0 0
        %422 = vmatprep.subr.bf16.mxu0 0
        %423 = vmatpush1.bf16.msra.mxu0 0
        %424 = vmatprep.subr.bf16.mxu0 0
        %425 = vmatpush1.bf16.msra.mxu0 0
        %426 = vmatprep.subr.bf16.mxu0 0
        %427 = vmatpush1.bf16.msra.mxu0 0
        %428 = vmatprep.subr.bf16.mxu0 0
        %429 = vmatpush1.bf16.msra.mxu0 0
        %430 = vmatprep.mubr.bf16.mxu0 %v396
        %431 = vmatmul.mubr.bf16.gmra.mrb[0].mxu0 %v392
        %v432 = vpop.f32.mrb[0].mxu0
        %v433 = vadd.f32 %v264, %v432
        %v434 = vpop.f32.mrb[0].mxu0
        %v435 = vpop.f32.mrb[0].mxu0
        %v436 = vadd.f32 %v264, %v435
        %v437 = vpop.f32.mrb[0].mxu0
        %438 = vdwg.mxu0
        %v439 = vtanh.pop %v433
        %v440 = vtanh.pop %v436
        %v441 = vadd.f32 %v381, %v439
        %v442 = vadd.f32 %v382, %v440
        %s443 = scalar_lea.vmem %s209, 32 [#allocation2]
        %v444 = vld [vmem:[%s443] sm:$0xff]
        %v445 = vld [vmem:[%s443 + $0x8] sm:$0xff]
        %v448 = vunpack.c.l.b16 %v444
        %v449 = vunpack.c.h.b16 %v444
        %v450 = vunpack.c.l.b16 %v445
        %v451 = vunpack.c.h.b16 %v445
        %v452 = vpack.c.b16 %v450, %v448
        %v453 = vpack.c.b16 %v451, %v449
        %v456 = vsel %vm332, %v453, 0
        %458 = vmatprep.subr.bf16.mxu0 0
        %459 = vmatpush1.bf16.msra.mxu0 %v313
        %460 = vmatprep.subr.bf16.mxu0 0
        %461 = vmatpush1.bf16.msra.mxu0 %v314
        %462 = vmatprep.subr.bf16.mxu0 0
        %463 = vmatpush1.bf16.msra.mxu0 %v315
        %464 = vmatprep.subr.bf16.mxu0 0
        %465 = vmatpush1.bf16.msra.mxu0 %v316
        %466 = vmatprep.subr.bf16.mxu0 0
        %467 = vmatpush1.bf16.msra.mxu0 %v317
        %468 = vmatprep.subr.bf16.mxu0 0
        %469 = vmatpush1.bf16.msra.mxu0 %v318
        %470 = vmatprep.subr.bf16.mxu0 0
        %471 = vmatpush1.bf16.msra.mxu0 %v319
        %472 = vmatprep.subr.bf16.mxu0 0
        %473 = vmatpush1.bf16.msra.mxu0 %v320
        %474 = vmatprep.subr.bf16.mxu0 0
        %475 = vmatpush1.bf16.msra.mxu0 %v321
        %476 = vmatprep.subr.bf16.mxu0 0
        %477 = vmatpush1.bf16.msra.mxu0 %v338
        %478 = vmatprep.subr.bf16.mxu0 0
        %479 = vmatpush1.bf16.msra.mxu0 0
        %480 = vmatprep.subr.bf16.mxu0 0
        %481 = vmatpush1.bf16.msra.mxu0 0
        %482 = vmatprep.subr.bf16.mxu0 0
        %483 = vmatpush1.bf16.msra.mxu0 0
        %484 = vmatprep.subr.bf16.mxu0 0
        %485 = vmatpush1.bf16.msra.mxu0 0
        %486 = vmatprep.subr.bf16.mxu0 0
        %487 = vmatpush1.bf16.msra.mxu0 0
        %488 = vmatprep.subr.bf16.mxu0 0
        %489 = vmatpush1.bf16.msra.mxu0 0
        %490 = vmatprep.mubr.bf16.mxu0 %v456
        %491 = vmatmul.mubr.bf16.gmra.mrb[0].mxu0 %v452
        %v492 = vpop.f32.mrb[0].mxu0
        %v493 = vadd.f32 %v264, %v492
        %v494 = vpop.f32.mrb[0].mxu0
        %v495 = vpop.f32.mrb[0].mxu0
        %v496 = vadd.f32 %v264, %v495
        %v497 = vpop.f32.mrb[0].mxu0
        %498 = vdwg.mxu0
        %v499 = vtanh.pop %v493
        %v500 = vtanh.pop %v496
        %v501 = vadd.f32 %v441, %v499
        %v502 = vadd.f32 %v442, %v500
        %s503 = scalar_lea.vmem %s209, 48 [#allocation2]
        %v504 = vld [vmem:[%s503] sm:$0xff]
        %v505 = vld [vmem:[%s503 + $0x8] sm:$0xff]
        %v508 = vunpack.c.l.b16 %v504
        %v509 = vunpack.c.h.b16 %v504
        %v510 = vunpack.c.l.b16 %v505
        %v511 = vunpack.c.h.b16 %v505
        %v512 = vpack.c.b16 %v510, %v508
        %v513 = vpack.c.b16 %v511, %v509
        %v516 = vsel %vm332, %v513, 0
        %518 = vmatprep.subr.bf16.mxu0 0
        %519 = vmatpush1.bf16.msra.mxu0 %v313
        %520 = vmatprep.subr.bf16.mxu0 0
        %521 = vmatpush1.bf16.msra.mxu0 %v314
        %522 = vmatprep.subr.bf16.mxu0 0
        %523 = vmatpush1.bf16.msra.mxu0 %v315
        %524 = vmatprep.subr.bf16.mxu0 0
        %525 = vmatpush1.bf16.msra.mxu0 %v316
        %526 = vmatprep.subr.bf16.mxu0 0
        %527 = vmatpush1.bf16.msra.mxu0 %v317
        %528 = vmatprep.subr.bf16.mxu0 0
        %529 = vmatpush1.bf16.msra.mxu0 %v318
        %530 = vmatprep.subr.bf16.mxu0 0
        %531 = vmatpush1.bf16.msra.mxu0 %v319
        %532 = vmatprep.subr.bf16.mxu0 0
        %533 = vmatpush1.bf16.msra.mxu0 %v320
        %534 = vmatprep.subr.bf16.mxu0 0
        %535 = vmatpush1.bf16.msra.mxu0 %v321
        %536 = vmatprep.subr.bf16.mxu0 0
        %537 = vmatpush1.bf16.msra.mxu0 %v338
        %538 = vmatprep.subr.bf16.mxu0 0
        %539 = vmatpush1.bf16.msra.mxu0 0
        %540 = vmatprep.subr.bf16.mxu0 0
        %541 = vmatpush1.bf16.msra.mxu0 0
        %542 = vmatprep.subr.bf16.mxu0 0
        %543 = vmatpush1.bf16.msra.mxu0 0
        %544 = vmatprep.subr.bf16.mxu0 0
        %545 = vmatpush1.bf16.msra.mxu0 0
        %546 = vmatprep.subr.bf16.mxu0 0
        %547 = vmatpush1.bf16.msra.mxu0 0
        %548 = vmatprep.subr.bf16.mxu0 0
        %549 = vmatpush1.bf16.msra.mxu0 0
        %550 = vmatprep.mubr.bf16.mxu0 %v516
        %551 = vmatmul.mubr.bf16.gmra.mrb[0].mxu0 %v512
        %v552 = vpop.f32.mrb[0].mxu0
        %v553 = vadd.f32 %v264, %v552
        %v554 = vpop.f32.mrb[0].mxu0
        %v555 = vpop.f32.mrb[0].mxu0
        %v556 = vadd.f32 %v264, %v555
        %v557 = vpop.f32.mrb[0].mxu0
        %558 = vdwg.mxu0
        %v559 = vtanh.pop %v553
        %v560 = vtanh.pop %v556
        %v561 = vadd.f32 %v501, %v559
        %v562 = vadd.f32 %v502, %v560
        %v563 = vmul.f32 %v561, 0.25
        %v564 = vmul.f32 %v562, 0.25
        %v565 = vpack.c.bf16 %v564, %v563
        %v567 = vunpack.c.l.b16 %v565
        %v568 = vunpack.c.h.b16 %v565
        %v569 = vpack.c.b16 %v567, %v567
        %v570 = vpack.c.b16 %v568, %v568
        %vm573 = vcmask 125952
        %574 = vst.msk [vmem:[%s235] sm:$0xf] %vm573, %v569
        %575 = vst.msk [vmem:[%s235 + $0x4] sm:$0xf] %vm573, %v570
        %s576 = smul.u32 2, %s14
        %p577 = scmp.lt.s32.totalorder %s576, 3
        %s578 = scalar_select %p577, %s576, 3
        %s579 = smul.addr %s578, 4
        %s580 = scalar_lea.vmem %s3, %s579
        // Predicated region
        $region71: #{lenet5_forward.4} parent=65 // pred_check
          %p581 = pneg %p100
        $region72: #{lenet5_forward.4} parent=65 // pred_check_branch
          %583 = sbr.rel (%p581) target = $region74
        $region73: #{lenet5_forward.4} parent=65 // pred_region
          %s584 = smul.u32 2, %s14
        $region74: #{lenet5_forward.4} parent=65 // pred_fallthru
          _
      $region66: #{lenet5_forward.4} parent=5 // pred_fallthru
        _
      %p585 = scmp.le.s32.totalorder 2, %s9
      // Predicated region
      $region75: #{lenet5_forward.4} parent=5 // pred_check
        %p586 = pneg %p585
      $region76: #{lenet5_forward.4} parent=5 // pred_check_branch
        %588 = sbr.rel (%p586) target = $region78
      $region77: #{lenet5_forward.4} parent=5 // pred_region
        %s589 = ssub.s32 %s9, 2
        // Predicated region
        $region79: #{lenet5_forward.4} parent=77 // pred_check
          %p590 = pneg %p106
        $region80: #{lenet5_forward.4} parent=77 // pred_check_branch
          %592 = sbr.rel (%p590) target = $region82
        $region81: #{lenet5_forward.4} parent=77 // pred_region
          %s593 = smul.u32 2, %s15
          %p594 = scmp.lt.s32.totalorder %s593, 3
          %s595 = scalar_select %p594, %s593, 3
          %s596 = smul.addr %s595, 4
          %s597 = scalar_lea.vmem %s3, %s596
        $region82: #{lenet5_forward.4} parent=77 // pred_fallthru
          _
      $region78: #{lenet5_forward.4} parent=5 // pred_fallthru
        _
    $region6: #{lenet5_forward.4} parent=1 // loop_footer
      %s13 = sadd.s32 1, %s9
    $region7: #{lenet5_forward.4} parent=1 // loop_footer_branch
      %8 = sbr.rel target = $region3
    $region8: #{lenet5_forward.4} parent=1 // loop_exit
      _

// kernel: lenet5_forward.5
$region0: #{lenet5_forward.5}
  #allocation0 [shape = 'u32[]', space=smem, size = 0x4, offset = 0x4, fixed_abs, tag = 'smem constant byte address 0x4 - core index']
  #allocation1 [shape = 'u32[144,128]{1,0:T(1,128)}', space=vmem, size = 0x12000, scoped, tag = 'internal scratch']
  %s0 = inlined_call_operand.vmem [shape: bf16[16,256], index: 0, kind: input, shape index: {}]
  %s1 = inlined_call_operand.vmem [shape: bf16[256,120], index: 1, kind: input, shape index: {}]
  %s2 = inlined_call_operand.vmem [shape: f32[1,120], index: 2, kind: input, shape index: {}]
  %s3 = inlined_call_operand.vmem [shape: bf16[120,84], index: 3, kind: input, shape index: {}]
  %s4 = inlined_call_operand.vmem [shape: f32[1,84], index: 4, kind: input, shape index: {}]
  %s5 = inlined_call_operand.vmem [shape: bf16[84,10], index: 5, kind: input, shape index: {}]
  %s6 = inlined_call_operand.vmem [shape: f32[1,10], index: 6, kind: input, shape index: {}]
  %s7 = inlined_call_operand.vmem [shape: f32[16,10], index: 7, kind: output, shape index: {}]
  %s8 = sld [smem:[#allocation0]]
  $region38: #{lenet5_forward.5} parent=0
    _
  %s10 = ssub.s32 1, %s8
  %s11 = scalar_select 0, %s10, %s8
  // Predicated region
  $region2: #{lenet5_forward.5} parent=0 // pred_check
    _
  $region3: #{lenet5_forward.5} parent=0 // pred_check_branch
    %13 = sbr.rel (0) target = $region5
  $region4: #{lenet5_forward.5} parent=0 // pred_region
    _
  $region5: #{lenet5_forward.5} parent=0 // pred_fallthru
    _
  // Predicated region
  $region6: #{lenet5_forward.5} parent=0 // pred_check
    _
  $region7: #{lenet5_forward.5} parent=0 // pred_check_branch
    %15 = sbr.rel (0) target = $region9
  $region8: #{lenet5_forward.5} parent=0 // pred_region
    _
  $region9: #{lenet5_forward.5} parent=0 // pred_fallthru
    _
  // Predicated region
  $region10: #{lenet5_forward.5} parent=0 // pred_check
    _
  $region11: #{lenet5_forward.5} parent=0 // pred_check_branch
    %17 = sbr.rel (0) target = $region13
  $region12: #{lenet5_forward.5} parent=0 // pred_region
    _
  $region13: #{lenet5_forward.5} parent=0 // pred_fallthru
    _
  // Predicated region
  $region14: #{lenet5_forward.5} parent=0 // pred_check
    _
  $region15: #{lenet5_forward.5} parent=0 // pred_check_branch
    %19 = sbr.rel (0) target = $region17
  $region16: #{lenet5_forward.5} parent=0 // pred_region
    _
  $region17: #{lenet5_forward.5} parent=0 // pred_fallthru
    _
  // Predicated region
  $region18: #{lenet5_forward.5} parent=0 // pred_check
    _
  $region19: #{lenet5_forward.5} parent=0 // pred_check_branch
    %21 = sbr.rel (0) target = $region21
  $region20: #{lenet5_forward.5} parent=0 // pred_region
    _
  $region21: #{lenet5_forward.5} parent=0 // pred_fallthru
    _
  // Predicated region
  $region22: #{lenet5_forward.5} parent=0 // pred_check
    _
  $region23: #{lenet5_forward.5} parent=0 // pred_check_branch
    %23 = sbr.rel (0) target = $region25
  $region24: #{lenet5_forward.5} parent=0 // pred_region
    _
  $region25: #{lenet5_forward.5} parent=0 // pred_fallthru
    _
  // Predicated region
  $region26: #{lenet5_forward.5} parent=0 // pred_check
    _
  $region27: #{lenet5_forward.5} parent=0 // pred_check_branch
    %25 = sbr.rel (0) target = $region29
  $region28: #{lenet5_forward.5} parent=0 // pred_region
    _
  $region29: #{lenet5_forward.5} parent=0 // pred_fallthru
    _
  %v27 = vld [vmem:[%s0] sm:$0xff]
  %v28 = vld [vmem:[%s0 + $0x8] sm:$0xff]
  %v29 = vld [vmem:[%s1] sm:$0xf]
  %v30 = vld [vmem:[%s1 + $0x4] sm:$0xf]
  %v31 = vld [vmem:[%s1 + $0x8] sm:$0xf]
  %v32 = vld [vmem:[%s1 + $0xc] sm:$0xf]
  %v33 = vld [vmem:[%s1 + $0x10] sm:$0xf]
  %v34 = vld [vmem:[%s1 + $0x14] sm:$0xf]
  %v35 = vld [vmem:[%s1 + $0x18] sm:$0xf]
  %v36 = vld [vmem:[%s1 + $0x1c] sm:$0xf]
  %v37 = vld [vmem:[%s1 + $0x20] sm:$0xf]
  %v38 = vld [vmem:[%s1 + $0x24] sm:$0xf]
  %v39 = vld [vmem:[%s1 + $0x28] sm:$0xf]
  %v40 = vld [vmem:[%s1 + $0x2c] sm:$0xf]
  %v41 = vld [vmem:[%s1 + $0x30] sm:$0xf]
  %v42 = vld [vmem:[%s1 + $0x34] sm:$0xf]
  %v43 = vld [vmem:[%s1 + $0x38] sm:$0xf]
  %v44 = vld [vmem:[%s1 + $0x3c] sm:$0xf]
  %v45 = vld [vmem:[%s1 + $0x40] sm:$0xf]
  %v46 = vld [vmem:[%s1 + $0x44] sm:$0xf]
  %v47 = vld [vmem:[%s1 + $0x48] sm:$0xf]
  %v48 = vld [vmem:[%s1 + $0x4c] sm:$0xf]
  %v49 = vld [vmem:[%s1 + $0x50] sm:$0xf]
  %v50 = vld [vmem:[%s1 + $0x54] sm:$0xf]
  %v51 = vld [vmem:[%s1 + $0x58] sm:$0xf]
  %v52 = vld [vmem:[%s1 + $0x5c] sm:$0xf]
  %v53 = vld [vmem:[%s1 + $0x60] sm:$0xf]
  %v54 = vld [vmem:[%s1 + $0x64] sm:$0xf]
  %v55 = vld [vmem:[%s1 + $0x68] sm:$0xf]
  %v56 = vld [vmem:[%s1 + $0x6c] sm:$0xf]
  %v57 = vld [vmem:[%s1 + $0x70] sm:$0xf]
  %v58 = vld [vmem:[%s1 + $0x74] sm:$0xf]
  %v59 = vld [vmem:[%s1 + $0x78] sm:$0xf]
  %v60 = vld [vmem:[%s1 + $0x7c] sm:$0xf]
  %v61 = vld [vmem:[%s2] sm:$0x1]
  %v63 = vlaneseq
  %v64 = vshrl.u32 %v63, 7
  %v65 = vsub.s32 0, %v64
  %v66 = vrot.slane %v61, %v65
  %v70 = vunpack.c.l.b16 %v27
  %v71 = vunpack.c.h.b16 %v27
  %v72 = vunpack.c.l.b16 %v28
  %v73 = vunpack.c.h.b16 %v28
  %v74 = vpack.c.b16 %v72, %v70
  %v75 = vpack.c.b16 %v73, %v71
  %v110 = vunpack.c.l.b16 %v29
  %v111 = vunpack.c.l.b16 %v30
  %v112 = vunpack.c.l.b16 %v31
  %v113 = vunpack.c.l.b16 %v32
  %v114 = vunpack.c.l.b16 %v33
  %v115 = vunpack.c.l.b16 %v34
  %v116 = vunpack.c.l.b16 %v35
  %v117 = vunpack.c.l.b16 %v36
  %v118 = vunpack.c.l.b16 %v37
  %v119 = vunpack.c.l.b16 %v38
  %v120 = vunpack.c.l.b16 %v39
  %v121 = vunpack.c.l.b16 %v40
  %v122 = vunpack.c.l.b16 %v41
  %v123 = vunpack.c.l.b16 %v42
  %v124 = vunpack.c.l.b16 %v43
  %v125 = vunpack.c.l.b16 %v44
  %v126 = vunpack.c.l.b16 %v45
  %v127 = vunpack.c.l.b16 %v46
  %v128 = vunpack.c.l.b16 %v47
  %v129 = vunpack.c.l.b16 %v48
  %v130 = vunpack.c.l.b16 %v49
  %v131 = vunpack.c.l.b16 %v50
  %v132 = vunpack.c.l.b16 %v51
  %v133 = vunpack.c.l.b16 %v52
  %v134 = vunpack.c.l.b16 %v53
  %v135 = vunpack.c.l.b16 %v54
  %v136 = vunpack.c.l.b16 %v55
  %v137 = vunpack.c.l.b16 %v56
  %v138 = vunpack.c.l.b16 %v57
  %v139 = vunpack.c.l.b16 %v58
  %v140 = vunpack.c.l.b16 %v59
  %v141 = vunpack.c.l.b16 %v60
  %v142 = vpack.c.b16 %v111, %v110
  %v143 = vpack.c.b16 %v113, %v112
  %v144 = vpack.c.b16 %v115, %v114
  %v145 = vpack.c.b16 %v117, %v116
  %v146 = vpack.c.b16 %v119, %v118
  %v147 = vpack.c.b16 %v121, %v120
  %v148 = vpack.c.b16 %v123, %v122
  %v149 = vpack.c.b16 %v125, %v124
  %v150 = vpack.c.b16 %v127, %v126
  %v151 = vpack.c.b16 %v129, %v128
  %v152 = vpack.c.b16 %v131, %v130
  %v153 = vpack.c.b16 %v133, %v132
  %v154 = vpack.c.b16 %v135, %v134
  %v155 = vpack.c.b16 %v137, %v136
  %v156 = vpack.c.b16 %v139, %v138
  %v157 = vpack.c.b16 %v141, %v140
  %174 = vmatprep.subr.bf16.mxu0 0
  %175 = vmatpush1.bf16.msra.mxu0 %v142
  %176 = vmatprep.subr.bf16.mxu0 0
  %177 = vmatpush1.bf16.msra.mxu0 %v143
  %178 = vmatprep.subr.bf16.mxu0 0
  %179 = vmatpush1.bf16.msra.mxu0 %v144
  %180 = vmatprep.subr.bf16.mxu0 0
  %181 = vmatpush1.bf16.msra.mxu0 %v145
  %182 = vmatprep.subr.bf16.mxu0 0
  %183 = vmatpush1.bf16.msra.mxu0 %v146
  %184 = vmatprep.subr.bf16.mxu0 0
  %185 = vmatpush1.bf16.msra.mxu0 %v147
  %186 = vmatprep.subr.bf16.mxu0 0
  %187 = vmatpush1.bf16.msra.mxu0 %v148
  %188 = vmatprep.subr.bf16.mxu0 0
  %189 = vmatpush1.bf16.msra.mxu0 %v149
  %190 = vmatprep.subr.bf16.mxu0 0
  %191 = vmatpush1.bf16.msra.mxu0 %v150
  %192 = vmatprep.subr.bf16.mxu0 0
  %193 = vmatpush1.bf16.msra.mxu0 %v151
  %194 = vmatprep.subr.bf16.mxu0 0
  %195 = vmatpush1.bf16.msra.mxu0 %v152
  %196 = vmatprep.subr.bf16.mxu0 0
  %197 = vmatpush1.bf16.msra.mxu0 %v153
  %198 = vmatprep.subr.bf16.mxu0 0
  %199 = vmatpush1.bf16.msra.mxu0 %v154
  %200 = vmatprep.subr.bf16.mxu0 0
  %201 = vmatpush1.bf16.msra.mxu0 %v155
  %202 = vmatprep.subr.bf16.mxu0 0
  %203 = vmatpush1.bf16.msra.mxu0 %v156
  %204 = vmatprep.subr.bf16.mxu0 0
  %205 = vmatpush1.bf16.msra.mxu0 %v157
  %206 = vmatprep.mubr.bf16.mxu0 %v75
  %207 = vmatmul.mubr.bf16.gmra.mrb[0].mxu0 %v74
  %v208 = vpop.f32.mrb[0].mxu0
  %v209 = vadd.f32 %v66, %v208
  %v210 = vpop.f32.mrb[0].mxu0
  %v211 = vpop.f32.mrb[0].mxu0
  %v212 = vadd.f32 %v66, %v211
  %v213 = vpop.f32.mrb[0].mxu0
  %214 = vdwg.mxu0
  %v215 = vtanh.pop %v209
  %v216 = vtanh.pop %v212
  %v217 = vpack.c.bf16 %v216, %v215
  %v218 = vld [vmem:[%s3] sm:$0xf]
  %v219 = vld [vmem:[%s3 + $0x4] sm:$0xf]
  %v220 = vld [vmem:[%s3 + $0x8] sm:$0xf]
  %v221 = vld [vmem:[%s3 + $0xc] sm:$0xf]
  %v222 = vld [vmem:[%s3 + $0x10] sm:$0xf]
  %v223 = vld [vmem:[%s3 + $0x14] sm:$0xf]
  %v224 = vld [vmem:[%s3 + $0x18] sm:$0xf]
  %v225 = vld [vmem:[%s3 + $0x1c] sm:$0xf]
  %v226 = vld [vmem:[%s3 + $0x20] sm:$0xf]
  %v227 = vld [vmem:[%s3 + $0x24] sm:$0xf]
  %v228 = vld [vmem:[%s3 + $0x28] sm:$0xf]
  %v229 = vld [vmem:[%s3 + $0x2c] sm:$0xf]
  %v230 = vld [vmem:[%s3 + $0x30] sm:$0xf]
  %v231 = vld [vmem:[%s3 + $0x34] sm:$0xf]
  %v232 = vld [vmem:[%s3 + $0x38] sm:$0xf]
  %v233 = vld [vmem:[%s4] sm:$0x1]
  %v235 = vlaneseq
  %v236 = vshrl.u32 %v235, 7
  %v237 = vsub.s32 0, %v236
  %v238 = vrot.slane %v233, %v237
  %v255 = vunpack.c.l.b16 %v218
  %v256 = vunpack.c.l.b16 %v219
  %v257 = vunpack.c.l.b16 %v220
  %v258 = vunpack.c.l.b16 %v221
  %v259 = vunpack.c.l.b16 %v222
  %v260 = vunpack.c.l.b16 %v223
  %v261 = vunpack.c.l.b16 %v224
  %v262 = vunpack.c.l.b16 %v225
  %v263 = vunpack.c.l.b16 %v226
  %v264 = vunpack.c.l.b16 %v227
  %v265 = vunpack.c.l.b16 %v228
  %v266 = vunpack.c.l.b16 %v229
  %v267 = vunpack.c.l.b16 %v230
  %v268 = vunpack.c.l.b16 %v231
  %v269 = vunpack.c.l.b16 %v232
  %v270 = vpack.c.b16 %v256, %v255
  %v271 = vpack.c.b16 %v258, %v257
  %v272 = vpack.c.b16 %v260, %v259
  %v273 = vpack.c.b16 %v262, %v261
  %v274 = vpack.c.b16 %v264, %v263
  %v275 = vpack.c.b16 %v266, %v265
  %v276 = vpack.c.b16 %v268, %v267
  %v277 = vpack.c.b16 %v269, %v269
  %vm285 = vcmask 982016
  %v287 = vsel %vm285, %v217, 0
  %vm289 = vcmask 1043456
  %v291 = vsel %vm289, %v277, 0
  %293 = vmatprep.subr.bf16.mxu0 0
  %294 = vmatpush1.bf16.msra.mxu0 %v270
  %295 = vmatprep.subr.bf16.mxu0 0
  %296 = vmatpush1.bf16.msra.mxu0 %v271
  %297 = vmatprep.subr.bf16.mxu0 0
  %298 = vmatpush1.bf16.msra.mxu0 %v272
  %299 = vmatprep.subr.bf16.mxu0 0
  %300 = vmatpush1.bf16.msra.mxu0 %v273
  %301 = vmatprep.subr.bf16.mxu0 0
  %302 = vmatpush1.bf16.msra.mxu0 %v274
  %303 = vmatprep.subr.bf16.mxu0 0
  %304 = vmatpush1.bf16.msra.mxu0 %v275
  %305 = vmatprep.subr.bf16.mxu0 0
  %306 = vmatpush1.bf16.msra.mxu0 %v276
  %307 = vmatprep.subr.bf16.mxu0 0
  %308 = vmatpush1.bf16.msra.mxu0 %v291
  %309 = vmatprep.subr.bf16.mxu0 0
  %310 = vmatpush1.bf16.msra.mxu0 0
  %311 = vmatprep.subr.bf16.mxu0 0
  %312 = vmatpush1.bf16.msra.mxu0 0
  %313 = vmatprep.subr.bf16.mxu0 0
  %314 = vmatpush1.bf16.msra.mxu0 0
  %315 = vmatprep.subr.bf16.mxu0 0
  %316 = vmatpush1.bf16.msra.mxu0 0
  %317 = vmatprep.subr.bf16.mxu0 0
  %318 = vmatpush1.bf16.msra.mxu0 0
  %319 = vmatprep.subr.bf16.mxu0 0
  %320 = vmatpush1.bf16.msra.mxu0 0
  %321 = vmatprep.subr.bf16.mxu0 0
  %322 = vmatpush1.bf16.msra.mxu0 0
  %323 = vmatprep.subr.bf16.mxu0 0
  %324 = vmatpush1.bf16.msra.mxu0 0
  %325 = vmatprep.mubr.bf16.mxu0 0
  %326 = vmatmul.mubr.bf16.gmra.mrb[0].mxu0 %v287
  %v327 = vpop.f32.mrb[0].mxu0
  %v328 = vadd.f32 %v238, %v327
  %v329 = vpop.f32.mrb[0].mxu0
  %v330 = vpop.f32.mrb[0].mxu0
  %v331 = vadd.f32 %v238, %v330
  %v332 = vpop.f32.mrb[0].mxu0
  %333 = vdwg.mxu0
  %v334 = vtanh.pop %v328
  %v335 = vtanh.pop %v331
  %v336 = vpack.c.bf16 %v335, %v334
  %v337 = vld [vmem:[%s5] sm:$0xf]
  %v338 = vld [vmem:[%s5 + $0x4] sm:$0xf]
  %v339 = vld [vmem:[%s5 + $0x8] sm:$0xf]
  %v340 = vld [vmem:[%s5 + $0xc] sm:$0xf]
  %v341 = vld [vmem:[%s5 + $0x10] sm:$0xf]
  %v342 = vld [vmem:[%s5 + $0x14] sm:$0xf]
  %v343 = vld [vmem:[%s5 + $0x18] sm:$0xf]
  %v344 = vld [vmem:[%s5 + $0x1c] sm:$0xf]
  %v345 = vld [vmem:[%s5 + $0x20] sm:$0xf]
  %v346 = vld [vmem:[%s5 + $0x24] sm:$0xf]
  %v347 = vld [vmem:[%s5 + $0x28] sm:$0x3]
  %v348 = vld [vmem:[%s6] sm:$0x1]
  %v350 = vlaneseq
  %v351 = vshrl.u32 %v350, 7
  %v352 = vsub.s32 0, %v351
  %v353 = vrot.slane %v348, %v352
  %v366 = vunpack.c.l.b16 %v337
  %v367 = vunpack.c.l.b16 %v338
  %v368 = vunpack.c.l.b16 %v339
  %v369 = vunpack.c.l.b16 %v340
  %v370 = vunpack.c.l.b16 %v341
  %v371 = vunpack.c.l.b16 %v342
  %v372 = vunpack.c.l.b16 %v343
  %v373 = vunpack.c.l.b16 %v344
  %v374 = vunpack.c.l.b16 %v345
  %v375 = vunpack.c.l.b16 %v346
  %v376 = vunpack.c.l.b16 %v347
  %v377 = vpack.c.b16 %v367, %v366
  %v378 = vpack.c.b16 %v369, %v368
  %v379 = vpack.c.b16 %v371, %v370
  %v380 = vpack.c.b16 %v373, %v372
  %v381 = vpack.c.b16 %v375, %v374
  %v382 = vpack.c.b16 %v376, %v376
  %vm388 = vcmask 687104
  %v390 = vsel %vm388, %v336, 0
  %vm392 = vcmask 1041408
  %v394 = vsel %vm392, %v382, 0
  %396 = vmatprep.subr.bf16.mxu0 0
  %397 = vmatpush1.bf16.msra.mxu0 %v377
  %398 = vmatprep.subr.bf16.mxu0 0
  %399 = vmatpush1.bf16.msra.mxu0 %v378
  %400 = vmatprep.subr.bf16.mxu0 0
  %401 = vmatpush1.bf16.msra.mxu0 %v379
  %402 = vmatprep.subr.bf16.mxu0 0
  %403 = vmatpush1.bf16.msra.mxu0 %v380
  %404 = vmatprep.subr.bf16.mxu0 0
  %405 = vmatpush1.bf16.msra.mxu0 %v381
  %406 = vmatprep.subr.bf16.mxu0 0
  %407 = vmatpush1.bf16.msra.mxu0 %v394
  %408 = vmatprep.subr.bf16.mxu0 0
  %409 = vmatpush1.bf16.msra.mxu0 0
  %410 = vmatprep.subr.bf16.mxu0 0
  %411 = vmatpush1.bf16.msra.mxu0 0
  %412 = vmatprep.subr.bf16.mxu0 0
  %413 = vmatpush1.bf16.msra.mxu0 0
  %414 = vmatprep.subr.bf16.mxu0 0
  %415 = vmatpush1.bf16.msra.mxu0 0
  %416 = vmatprep.subr.bf16.mxu0 0
  %417 = vmatpush1.bf16.msra.mxu0 0
  %418 = vmatprep.subr.bf16.mxu0 0
  %419 = vmatpush1.bf16.msra.mxu0 0
  %420 = vmatprep.subr.bf16.mxu0 0
  %421 = vmatpush1.bf16.msra.mxu0 0
  %422 = vmatprep.subr.bf16.mxu0 0
  %423 = vmatpush1.bf16.msra.mxu0 0
  %424 = vmatprep.subr.bf16.mxu0 0
  %425 = vmatpush1.bf16.msra.mxu0 0
  %426 = vmatprep.subr.bf16.mxu0 0
  %427 = vmatpush1.bf16.msra.mxu0 0
  %428 = vmatprep.mubr.bf16.mxu0 0
  %429 = vmatmul.mubr.bf16.gmra.mrb[0].mxu0 %v390
  %v430 = vpop.f32.mrb[0].mxu0
  %v431 = vadd.f32 %v353, %v430
  %v432 = vpop.f32.mrb[0].mxu0
  %v433 = vpop.f32.mrb[0].mxu0
  %v434 = vadd.f32 %v353, %v433
  %v435 = vpop.f32.mrb[0].mxu0
  %436 = vdwg.mxu0
  %vm437 = vcmask 80896
  %438 = vst.msk [vmem:[%s7] sm:$0xff] %vm437, %v431
  %439 = vst.msk [vmem:[%s7 + $0x8] sm:$0xff] %vm437, %v434
  // Predicated region
  $region30: #{lenet5_forward.5} parent=0 // pred_check
    _
  $region31: #{lenet5_forward.5} parent=0 // pred_check_branch
    %441 = sbr.rel (0) target = $region33
  $region32: #{lenet5_forward.5} parent=0 // pred_region
    _
  $region33: #{lenet5_forward.5} parent=0 // pred_fallthru
    _
  // Predicated region
  $region34: #{lenet5_forward.5} parent=0 // pred_check
    _
  $region35: #{lenet5_forward.5} parent=0 // pred_check_branch
    %443 = sbr.rel (0) target = $region37
  $region36: #{lenet5_forward.5} parent=0 // pred_region
    _
  $region37: #{lenet5_forward.5} parent=0 // pred_fallthru
    _

</llo_original>
